<compile_context>
chip_gen: v5e
topology: v5e:2x2
jax: 0.10.0
libtpu: 0.0.40
codegen_flags: <defaults>
</compile_context>

<pallas_src>
import functools
import math

import jax
import jax.numpy as jnp
from jax.experimental import pallas as pl
from jax.experimental.pallas import tpu as pltpu


# Hidden sizes hard-coded in the PyTorch module, lane-padded to 128 multiples.
H_X_RAW, H_ATT_RAW = 1660, 665
H_X, H_ATT = 1664, 768            # 13*128, 6*128  (zero-padded)
H_TOT = H_X + H_ATT


def _round_up(n, m=128):
    return (n + m - 1) // m * m


# ----------------------------------------------------------------------------
# Fused kernel: both decoders, both latents, one launch.
# ----------------------------------------------------------------------------
def _decoder_cada_kernel(zx_ref, za_ref,
                         w1_ref, b1_ref,
                         xw2_ref, xb2_ref,
                         aw2_ref, ab2_ref,
                         recon_x_ref, recon_att_ref,
                         att_recon_x_ref, x_recon_att_ref,
                         z_scratch):
    B = zx_ref.shape[0]

    # Stack the two latents -> (2B, Z); cast once to bf16 for the MXU.
    z_scratch[0:B, :] = zx_ref[...].astype(z_scratch.dtype)
    z_scratch[B:2 * B, :] = za_ref[...].astype(z_scratch.dtype)
    z = z_scratch[...]

    # Layer 1: both decoders fused along the output-feature axis.
    h = jnp.dot(z, w1_ref[...], preferred_element_type=jnp.float32)
    h = jnp.maximum(h + b1_ref[...], 0.0)            # bias-add + ReLU in f32
    h = h.astype(jnp.bfloat16)

    # Split fused hidden activations (static, 128-aligned lane slices).
    hx = h[:, :H_X]                                   # decoder_x hidden
    ha = h[:, H_X:]                                   # decoder_att hidden

    # Layer 2: one matmul per decoder over the tall (2B, .) hidden block.
    out_x = jnp.dot(hx, xw2_ref[...], preferred_element_type=jnp.float32) + xb2_ref[...]
    out_a = jnp.dot(ha, aw2_ref[...], preferred_element_type=jnp.float32) + ab2_ref[...]

    # Rows 0:B came from z_x, rows B:2B from z_att.
    recon_x_ref[...] = out_x[:B].astype(recon_x_ref.dtype)      # decoder_x(z_x)
    x_recon_att_ref[...] = out_x[B:].astype(x_recon_att_ref.dtype)  # decoder_x(z_att)
    att_recon_x_ref[...] = out_a[:B].astype(att_recon_x_ref.dtype)  # decoder_att(z_x)
    recon_att_ref[...] = out_a[B:].astype(recon_att_ref.dtype)      # decoder_att(z_att)


def decoder_cada_pallas(params, z_x, z_att):
    """One fused pallas_call computing all four decoder_cada outputs (padded)."""
    B, Z = z_x.shape
    assert z_att.shape == (B, Z)
    assert B % 8 == 0, "batch must be a multiple of 8 (sublane alignment)"

    in_pad = params["x_w2"].shape[1]     # padded input_dim
    at_pad = params["a_w2"].shape[1]     # padded atts_dim

    def full(shape):
        # full-array block, single grid step
        return pl.BlockSpec(shape, lambda i: (0,) * len(shape))

    in_specs = (
        full((B, Z)), full((B, Z)),
        full(params["w1"].shape), full(params["b1"].shape),
        full(params["x_w2"].shape), full(params["x_b2"].shape),
        full(params["a_w2"].shape), full(params["a_b2"].shape),
    )
    out_specs = (
        full((B, in_pad)), full((B, at_pad)),
        full((B, at_pad)), full((B, in_pad)),
    )
    out_shape = (
        jax.ShapeDtypeStruct((B, in_pad), z_x.dtype),    # recon_x (padded)
        jax.ShapeDtypeStruct((B, at_pad), z_x.dtype),    # recon_att (padded)
        jax.ShapeDtypeStruct((B, at_pad), z_x.dtype),    # att_recon_x (padded)
        jax.ShapeDtypeStruct((B, in_pad), z_x.dtype),    # x_recon_att (padded)
    )

    # Advisory cost hint for XLA scheduling -- all pure-Python static math.
    flops = (2 * (2 * B) * Z * H_TOT
             + 2 * (2 * B) * H_X * in_pad
             + 2 * (2 * B) * H_ATT * at_pad)

    def nbytes(a):
        return int(a.size) * a.dtype.itemsize

    in_bytes = sum(nbytes(v) for v in (
        z_x, z_att, params["w1"], params["b1"],
        params["x_w2"], params["x_b2"], params["a_w2"], params["a_b2"]))
    out_bytes = sum(math.prod(s.shape) * jnp.dtype(s.dtype).itemsize
                    for s in out_shape)

    return pl.pallas_call(
        _decoder_cada_kernel,
        out_shape=out_shape,
        grid_spec=pl.GridSpec(
            grid=(1,),
            in_specs=in_specs,
            out_specs=out_specs,
            scratch_shapes=[pltpu.VMEM((2 * B, Z), jnp.bfloat16)],
        ),
        compiler_params=pltpu.CompilerParams(
            dimension_semantics=("arbitrary",),
        ),
        cost_estimate=pl.CostEstimate(
            flops=flops, transcendentals=0,
            bytes_accessed=in_bytes + out_bytes),
    )(z_x, z_att,
      params["w1"], params["b1"],
      params["x_w2"], params["x_b2"],
      params["a_w2"], params["a_b2"])


# ----------------------------------------------------------------------------
# Parameter init (matches weights_init: xavier_uniform(gain=0.5), bias = 0),
# with zero-padding of hidden and output feature dims, layer-1 weight fusion,
# and a one-time bf16 cast of the weight matrices.
# ----------------------------------------------------------------------------
def _xavier_uniform(key, fan_in, fan_out, gain=0.5):
    bound = gain * (6.0 / (fan_in + fan_out)) ** 0.5
    # stored as (in_features, out_features) == PyTorch weight.T
    return jax.random.uniform(key, (fan_in, fan_out), jnp.float32, -bound, bound)


def init_decoder_cada(key, input_dim, atts_dim, z_dim, weight_dtype=jnp.bfloat16):
    in_pad = _round_up(input_dim)
    at_pad = _round_up(atts_dim)
    k = jax.random.split(key, 4)

    x_w1 = _xavier_uniform(k[0], z_dim, H_X_RAW)          # (z, 1660)
    a_w1 = _xavier_uniform(k[1], z_dim, H_ATT_RAW)        # (z, 665)
    x_w2 = _xavier_uniform(k[2], H_X_RAW, input_dim)      # (1660, input_dim)
    a_w2 = _xavier_uniform(k[3], H_ATT_RAW, atts_dim)     # (665, atts_dim)

    # Fused layer-1 weight: (z, H_X + H_ATT); padded columns are zero.
    w1 = jnp.zeros((z_dim, H_TOT), jnp.float32)
    w1 = w1.at[:, :H_X_RAW].set(x_w1)
    w1 = w1.at[:, H_X:H_X + H_ATT_RAW].set(a_w1)

    # Layer-2 weights padded on both axes (zero rows for padded hidden units,
    # zero columns for padded output features).
    x_w2p = jnp.zeros((H_X, in_pad), jnp.float32).at[:H_X_RAW, :input_dim].set(x_w2)
    a_w2p = jnp.zeros((H_ATT, at_pad), jnp.float32).at[:H_ATT_RAW, :atts_dim].set(a_w2)

    return {
        "w1": w1.astype(weight_dtype),
        "b1": jnp.zeros((1, H_TOT), jnp.float32),
        "x_w2": x_w2p.astype(weight_dtype),
        "x_b2": jnp.zeros((1, in_pad), jnp.float32),
        "a_w2": a_w2p.astype(weight_dtype),
        "a_b2": jnp.zeros((1, at_pad), jnp.float32),
    }


# ----------------------------------------------------------------------------
# Forward (output order matches decoder_cada.forward) + pure-JAX reference.
# ----------------------------------------------------------------------------
@functools.partial(jax.jit, static_argnames=("input_dim", "atts_dim"))
def decoder_cada_forward(params, z_x, z_att, *, input_dim, atts_dim):
    rx, ra, arx, xra = decoder_cada_pallas(params, z_x, z_att)
    # strip output-feature padding (no-op when dims are already 128-multiples)
    return (rx[:, :input_dim], ra[:, :atts_dim],
            arx[:, :atts_dim], xra[:, :input_dim])


def _ref_forward(params, z_x, z_att, input_dim, atts_dim):
    """f32 reference using the same (bf16-quantized) weights, unfused math."""
    w1 = params["w1"].astype(jnp.float32)
    xw2 = params["x_w2"].astype(jnp.float32)
    aw2 = params["a_w2"].astype(jnp.float32)

    def dec_x(z):
        h = jnp.maximum(z @ w1[:, :H_X] + params["b1"][:, :H_X], 0.0)
        return (h @ xw2 + params["x_b2"])[:, :input_dim]

    def dec_a(z):
        h = jnp.maximum(z @ w1[:, H_X:] + params["b1"][:, H_X:], 0.0)
        return (h @ aw2 + params["a_b2"])[:, :atts_dim]

    return dec_x(z_x), dec_a(z_att), dec_a(z_x), dec_x(z_att)


if __name__ == "__main__":
    # Small shapes consistent with the module: input_dim/atts_dim/z are ctor
    # args; hidden sizes 1660/665 are fixed (internally padded to 1664/768).
    # atts_dim=120 deliberately exercises the output-feature padding path.
    B, Z, INPUT_DIM, ATTS_DIM = 8, 64, 256, 120

    key = jax.random.PRNGKey(0)
    kp, kx, ka = jax.random.split(key, 3)
    params = init_decoder_cada(kp, INPUT_DIM, ATTS_DIM, Z)
    z_x = jax.random.normal(kx, (B, Z), jnp.float32)
    z_att = jax.random.normal(ka, (B, Z), jnp.float32)

    outs = decoder_cada_forward(params, z_x, z_att,
                                input_dim=INPUT_DIM, atts_dim=ATTS_DIM)
    outs = jax.block_until_ready(outs)

    refs = _ref_forward(params, z_x, z_att, INPUT_DIM, ATTS_DIM)
    expected_shapes = {
        "recon_x": (B, INPUT_DIM),
        "recon_att": (B, ATTS_DIM),
        "att_recon_x": (B, ATTS_DIM),
        "x_recon_att": (B, INPUT_DIM),
    }
    # bf16 activations in-kernel vs f32 reference -> relaxed tolerance.
    for name, o, r in zip(("recon_x", "recon_att", "att_recon_x", "x_recon_att"),
                          outs, refs):
        assert o.shape == expected_shapes[name], (name, o.shape)
        assert jnp.allclose(o, r, atol=1e-2, rtol=1e-2), f"mismatch in {name}"

    print("KERNEL_OK")
</pallas_src>

<mosaic_0001>
module attributes {stable_mosaic.version = 11 : i64} {
  func.func @_decoder_cada_kernel(%arg0: i32, %arg1: memref<8x64xf32, #tpu.memory_space<vmem>>, %arg2: memref<8x64xf32, #tpu.memory_space<vmem>>, %arg3: memref<64x2432xbf16, #tpu.memory_space<vmem>>, %arg4: memref<1x2432xf32, #tpu.memory_space<vmem>>, %arg5: memref<1664x256xbf16, #tpu.memory_space<vmem>>, %arg6: memref<1x256xf32, #tpu.memory_space<vmem>>, %arg7: memref<768x128xbf16, #tpu.memory_space<vmem>>, %arg8: memref<1x128xf32, #tpu.memory_space<vmem>>, %arg9: memref<8x256xf32, #tpu.memory_space<vmem>>, %arg10: memref<8x128xf32, #tpu.memory_space<vmem>>, %arg11: memref<8x128xf32, #tpu.memory_space<vmem>>, %arg12: memref<8x256xf32, #tpu.memory_space<vmem>>, %arg13: memref<16x64xbf16, #tpu.memory_space<vmem>>) attributes {dimension_semantics = [#tpu.dimension_semantics<arbitrary>], iteration_bounds = array<i64: 1>, scalar_prefetch = 0 : i64, scratch_operands = 1 : i64, tpu.core_type = #tpu.core_type<tc>, window_params = [{pipeline_mode = #tpu.pipeline_mode<synchronous>, transform_indices = @transform_0, window_bounds = array<i64: 8, 64>}, {pipeline_mode = #tpu.pipeline_mode<synchronous>, transform_indices = @transform_1, window_bounds = array<i64: 8, 64>}, {pipeline_mode = #tpu.pipeline_mode<synchronous>, transform_indices = @transform_2, window_bounds = array<i64: 64, 2432>}, {pipeline_mode = #tpu.pipeline_mode<synchronous>, transform_indices = @transform_3, window_bounds = array<i64: 1, 2432>}, {pipeline_mode = #tpu.pipeline_mode<synchronous>, transform_indices = @transform_4, window_bounds = array<i64: 1664, 256>}, {pipeline_mode = #tpu.pipeline_mode<synchronous>, transform_indices = @transform_5, window_bounds = array<i64: 1, 256>}, {pipeline_mode = #tpu.pipeline_mode<synchronous>, transform_indices = @transform_6, window_bounds = array<i64: 768, 128>}, {pipeline_mode = #tpu.pipeline_mode<synchronous>, transform_indices = @transform_7, window_bounds = array<i64: 1, 128>}, {pipeline_mode = #tpu.pipeline_mode<synchronous>, transform_indices = @transform_8, window_bounds = array<i64: 8, 256>}, {pipeline_mode = #tpu.pipeline_mode<synchronous>, transform_indices = @transform_9, window_bounds = array<i64: 8, 128>}, {pipeline_mode = #tpu.pipeline_mode<synchronous>, transform_indices = @transform_10, window_bounds = array<i64: 8, 128>}, {pipeline_mode = #tpu.pipeline_mode<synchronous>, transform_indices = @transform_11, window_bounds = array<i64: 8, 256>}]} {
    %c0 = arith.constant 0 : index
    %c0_0 = arith.constant 0 : index
    %0 = vector.load %arg1[%c0, %c0_0] : memref<8x64xf32, #tpu.memory_space<vmem>>, vector<8x64xf32>
    %1 = arith.truncf %0 : vector<8x64xf32> to vector<8x64xbf16>
    %c0_1 = arith.constant 0 : index
    %c0_2 = arith.constant 0 : index
    %2 = vector.load %arg13[%c0_1, %c0_2] : memref<16x64xbf16, #tpu.memory_space<vmem>>, vector<8x64xbf16>
    tpu.vector_store %arg13[%c0_1, %c0_2], %1 {strides = array<i32>} : memref<16x64xbf16, #tpu.memory_space<vmem>>, vector<8x64xbf16>,
    %c0_3 = arith.constant 0 : index
    %c0_4 = arith.constant 0 : index
    %3 = vector.load %arg2[%c0_3, %c0_4] : memref<8x64xf32, #tpu.memory_space<vmem>>, vector<8x64xf32>
    %4 = arith.truncf %3 : vector<8x64xf32> to vector<8x64xbf16>
    %c8 = arith.constant 8 : index
    %c0_5 = arith.constant 0 : index
    %5 = vector.load %arg13[%c8, %c0_5] : memref<16x64xbf16, #tpu.memory_space<vmem>>, vector<8x64xbf16>
    tpu.vector_store %arg13[%c8, %c0_5], %4 {strides = array<i32>} : memref<16x64xbf16, #tpu.memory_space<vmem>>, vector<8x64xbf16>,
    %c0_6 = arith.constant 0 : index
    %c0_7 = arith.constant 0 : index
    %6 = vector.load %arg13[%c0_6, %c0_7] : memref<16x64xbf16, #tpu.memory_space<vmem>>, vector<16x64xbf16>
    %c0_8 = arith.constant 0 : index
    %c0_9 = arith.constant 0 : index
    %7 = vector.load %arg3[%c0_8, %c0_9] : memref<64x2432xbf16, #tpu.memory_space<vmem>>, vector<64x2432xbf16>
    %cst = arith.constant dense<0.000000e+00> : vector<16x2432xf32>
    %8 = tpu.matmul %6, %7, %cst {dimension_numbers = #tpu.dot_dimension_numbers<[1], [0], [0], [1], [0, 0, 1, 1], [], []>} : vector<16x64xbf16>, vector<64x2432xbf16>, vector<16x2432xf32> -> vector<16x2432xf32>
    %c0_10 = arith.constant 0 : index
    %c0_11 = arith.constant 0 : index
    %9 = vector.load %arg4[%c0_10, %c0_11] : memref<1x2432xf32, #tpu.memory_space<vmem>>, vector<1x2432xf32>
    %10 = vector.broadcast %9 : vector<1x2432xf32> to vector<16x2432xf32>
    %11 = arith.addf %8, %10 : vector<16x2432xf32>
    %cst_12 = arith.constant 0.000000e+00 : f32
    %12 = vector.broadcast %cst_12 : f32 to vector<16x2432xf32>
    %13 = arith.maximumf %11, %12 : vector<16x2432xf32>
    %14 = arith.truncf %13 : vector<16x2432xf32> to vector<16x2432xbf16>
    %15 = vector.extract_strided_slice %14 {offsets = [0, 0], sizes = [16, 1664], strides = [1, 1]} : vector<16x2432xbf16> to vector<16x1664xbf16>
    %16 = vector.extract_strided_slice %14 {offsets = [0, 1664], sizes = [16, 768], strides = [1, 1]} : vector<16x2432xbf16> to vector<16x768xbf16>
    %c0_13 = arith.constant 0 : index
    %c0_14 = arith.constant 0 : index
    %17 = vector.load %arg5[%c0_13, %c0_14] : memref<1664x256xbf16, #tpu.memory_space<vmem>>, vector<1664x256xbf16>
    %cst_15 = arith.constant dense<0.000000e+00> : vector<16x256xf32>
    %18 = tpu.matmul %15, %17, %cst_15 {dimension_numbers = #tpu.dot_dimension_numbers<[1], [0], [0], [1], [0, 0, 1, 1], [], []>} : vector<16x1664xbf16>, vector<1664x256xbf16>, vector<16x256xf32> -> vector<16x256xf32>
    %c0_16 = arith.constant 0 : index
    %c0_17 = arith.constant 0 : index
    %19 = vector.load %arg6[%c0_16, %c0_17] : memref<1x256xf32, #tpu.memory_space<vmem>>, vector<1x256xf32>
    %20 = vector.broadcast %19 : vector<1x256xf32> to vector<16x256xf32>
    %21 = arith.addf %18, %20 : vector<16x256xf32>
    %c0_18 = arith.constant 0 : index
    %c0_19 = arith.constant 0 : index
    %22 = vector.load %arg7[%c0_18, %c0_19] : memref<768x128xbf16, #tpu.memory_space<vmem>>, vector<768x128xbf16>
    %cst_20 = arith.constant dense<0.000000e+00> : vector<16x128xf32>
    %23 = tpu.matmul %16, %22, %cst_20 {dimension_numbers = #tpu.dot_dimension_numbers<[1], [0], [0], [1], [0, 0, 1, 1], [], []>} : vector<16x768xbf16>, vector<768x128xbf16>, vector<16x128xf32> -> vector<16x128xf32>
    %c0_21 = arith.constant 0 : index
    %c0_22 = arith.constant 0 : index
    %24 = vector.load %arg8[%c0_21, %c0_22] : memref<1x128xf32, #tpu.memory_space<vmem>>, vector<1x128xf32>
    %25 = vector.broadcast %24 : vector<1x128xf32> to vector<16x128xf32>
    %26 = arith.addf %23, %25 : vector<16x128xf32>
    %27 = vector.extract_strided_slice %21 {offsets = [0, 0], sizes = [8, 256], strides = [1, 1]} : vector<16x256xf32> to vector<8x256xf32>
    %c0_23 = arith.constant 0 : index
    %c0_24 = arith.constant 0 : index
    %28 = vector.load %arg9[%c0_23, %c0_24] : memref<8x256xf32, #tpu.memory_space<vmem>>, vector<8x256xf32>
    tpu.vector_store %arg9[%c0_23, %c0_24], %27 {strides = array<i32>} : memref<8x256xf32, #tpu.memory_space<vmem>>, vector<8x256xf32>,
    %29 = vector.extract_strided_slice %21 {offsets = [8, 0], sizes = [8, 256], strides = [1, 1]} : vector<16x256xf32> to vector<8x256xf32>
    %c0_25 = arith.constant 0 : index
    %c0_26 = arith.constant 0 : index
    %30 = vector.load %arg12[%c0_25, %c0_26] : memref<8x256xf32, #tpu.memory_space<vmem>>, vector<8x256xf32>
    tpu.vector_store %arg12[%c0_25, %c0_26], %29 {strides = array<i32>} : memref<8x256xf32, #tpu.memory_space<vmem>>, vector<8x256xf32>,
    %31 = vector.extract_strided_slice %26 {offsets = [0, 0], sizes = [8, 128], strides = [1, 1]} : vector<16x128xf32> to vector<8x128xf32>
    %c0_27 = arith.constant 0 : index
    %c0_28 = arith.constant 0 : index
    %32 = vector.load %arg11[%c0_27, %c0_28] : memref<8x128xf32, #tpu.memory_space<vmem>>, vector<8x128xf32>
    tpu.vector_store %arg11[%c0_27, %c0_28], %31 {strides = array<i32>} : memref<8x128xf32, #tpu.memory_space<vmem>>, vector<8x128xf32>,
    %33 = vector.extract_strided_slice %26 {offsets = [8, 0], sizes = [8, 128], strides = [1, 1]} : vector<16x128xf32> to vector<8x128xf32>
    %c0_29 = arith.constant 0 : index
    %c0_30 = arith.constant 0 : index
    %34 = vector.load %arg10[%c0_29, %c0_30] : memref<8x128xf32, #tpu.memory_space<vmem>>, vector<8x128xf32>
    tpu.vector_store %arg10[%c0_29, %c0_30], %33 {strides = array<i32>} : memref<8x128xf32, #tpu.memory_space<vmem>>, vector<8x128xf32>,
    return
  }
  func.func @transform_0(%arg0: i32) -> (i32, i32) {
    %c0_i32 = arith.constant 0 : i32
    %c0_i32_0 = arith.constant 0 : i32
    %c0_i32_1 = arith.constant 0 : i32
    return %c0_i32, %c0_i32_0 : i32, i32
  }
  func.func @transform_1(%arg0: i32) -> (i32, i32) {
    %c0_i32 = arith.constant 0 : i32
    %c0_i32_0 = arith.constant 0 : i32
    %c0_i32_1 = arith.constant 0 : i32
    return %c0_i32, %c0_i32_0 : i32, i32
  }
  func.func @transform_2(%arg0: i32) -> (i32, i32) {
    %c0_i32 = arith.constant 0 : i32
    %c0_i32_0 = arith.constant 0 : i32
    %c0_i32_1 = arith.constant 0 : i32
    return %c0_i32, %c0_i32_0 : i32, i32
  }
  func.func @transform_3(%arg0: i32) -> (i32, i32) {
    %c0_i32 = arith.constant 0 : i32
    %c0_i32_0 = arith.constant 0 : i32
    %c0_i32_1 = arith.constant 0 : i32
    return %c0_i32, %c0_i32_0 : i32, i32
  }
  func.func @transform_4(%arg0: i32) -> (i32, i32) {
    %c0_i32 = arith.constant 0 : i32
    %c0_i32_0 = arith.constant 0 : i32
    %c0_i32_1 = arith.constant 0 : i32
    return %c0_i32, %c0_i32_0 : i32, i32
  }
  func.func @transform_5(%arg0: i32) -> (i32, i32) {
    %c0_i32 = arith.constant 0 : i32
    %c0_i32_0 = arith.constant 0 : i32
    %c0_i32_1 = arith.constant 0 : i32
    return %c0_i32, %c0_i32_0 : i32, i32
  }
  func.func @transform_6(%arg0: i32) -> (i32, i32) {
    %c0_i32 = arith.constant 0 : i32
    %c0_i32_0 = arith.constant 0 : i32
    %c0_i32_1 = arith.constant 0 : i32
    return %c0_i32, %c0_i32_0 : i32, i32
  }
  func.func @transform_7(%arg0: i32) -> (i32, i32) {
    %c0_i32 = arith.constant 0 : i32
    %c0_i32_0 = arith.constant 0 : i32
    %c0_i32_1 = arith.constant 0 : i32
    return %c0_i32, %c0_i32_0 : i32, i32
  }
  func.func @transform_8(%arg0: i32) -> (i32, i32) {
    %c0_i32 = arith.constant 0 : i32
    %c0_i32_0 = arith.constant 0 : i32
    %c0_i32_1 = arith.constant 0 : i32
    return %c0_i32, %c0_i32_0 : i32, i32
  }
  func.func @transform_9(%arg0: i32) -> (i32, i32) {
    %c0_i32 = arith.constant 0 : i32
    %c0_i32_0 = arith.constant 0 : i32
    %c0_i32_1 = arith.constant 0 : i32
    return %c0_i32, %c0_i32_0 : i32, i32
  }
  func.func @transform_10(%arg0: i32) -> (i32, i32) {
    %c0_i32 = arith.constant 0 : i32
    %c0_i32_0 = arith.constant 0 : i32
    %c0_i32_1 = arith.constant 0 : i32
    return %c0_i32, %c0_i32_0 : i32, i32
  }
  func.func @transform_11(%arg0: i32) -> (i32, i32) {
    %c0_i32 = arith.constant 0 : i32
    %c0_i32_0 = arith.constant 0 : i32
    %c0_i32_1 = arith.constant 0 : i32
    return %c0_i32, %c0_i32_0 : i32, i32
  }
}

</mosaic_0001>

<llo_original>
// kernel: decoder_cada_forward.1
$region0: #{decoder_cada_forward.1}
  #allocation0 [shape = 'u32[]', space=smem, size = 0x4, offset = 0x4, fixed_abs, tag = 'smem constant byte address 0x4 - core index']
  #allocation1 [shape = 'u32[72,128]{1,0:T(1,128)}', space=vmem, size = 0x9000, scoped, tag = 'internal scratch']
  #allocation2 [shape = 'bf16[16,64]{1,0:T(8,128)(2,1)}', space=vmem, size = 0x1000, scoped, tag = 'scratch operand']
  %s0 = inlined_call_operand.hbm [shape: f32[8,64], index: 0, kind: input, shape index: {}]
  %s1 = inlined_call_operand.hbm [shape: f32[8,64], index: 1, kind: input, shape index: {}]
  %s2 = inlined_call_operand.hbm [shape: bf16[64,2432], index: 2, kind: input, shape index: {}]
  %s3 = inlined_call_operand.hbm [shape: f32[1,2432], index: 3, kind: input, shape index: {}]
  %s4 = inlined_call_operand.hbm [shape: bf16[1664,256], index: 4, kind: input, shape index: {}]
  %s5 = inlined_call_operand.vmem [shape: f32[1,256], index: 5, kind: input, shape index: {}]
  %s6 = inlined_call_operand.hbm [shape: bf16[768,128], index: 6, kind: input, shape index: {}]
  %s7 = inlined_call_operand.hbm [shape: f32[1,128], index: 7, kind: input, shape index: {}]
  %s8 = inlined_call_operand.hbm [shape: f32[8,256], index: 8, kind: output, shape index: {0}]
  %s9 = inlined_call_operand.hbm [shape: f32[8,128], index: 9, kind: output, shape index: {1}]
  %s10 = inlined_call_operand.hbm [shape: f32[8,128], index: 10, kind: output, shape index: {2}]
  %s11 = inlined_call_operand.hbm [shape: f32[8,256], index: 11, kind: output, shape index: {3}]
  %12 = xla_tuple %s8, %s9, %s10, %s11
  %s13 = sld [smem:[#allocation0]]
  $region94: #{decoder_cada_forward.1} parent=0
    _
  %s15 = ssub.s32 1, %s13
  %s16 = scalar_select 0, %s15, %s13
  $region1: #{decoder_cada_forward.1} parent=0
    #allocation3 [shape = 'u8[4096]{0}', space=vmem, size = 0x1000, scoped, tag = 'input window, operand 0, single buffered']
    #allocation4 [shape = 's32[1]{0}', space=sflag, size = 0x4, scoped, tag = 'scoped memory for decoder_cada_forward.1']
    #allocation5 [shape = 's32[1]{0}', space=sflag, size = 0x4, scoped, tag = 'scoped memory for decoder_cada_forward.1']
    #allocation6 [shape = 'u8[4096]{0}', space=vmem, size = 0x1000, scoped, tag = 'input window, operand 1, single buffered']
    #allocation7 [shape = 's32[1]{0}', space=sflag, size = 0x4, scoped, tag = 'scoped memory for decoder_cada_forward.1']
    #allocation8 [shape = 'u8[311296]{0}', space=vmem, size = 0x4c000, scoped, tag = 'input window, operand 2, single buffered']
    #allocation9 [shape = 'u8[9728]{0}', space=vmem, size = 0x2800, scoped, tag = 'input window, operand 3, single buffered']
    #allocation10 [shape = 's32[1]{0}', space=sflag, size = 0x4, scoped, tag = 'scoped memory for decoder_cada_forward.1']
    #allocation11 [shape = 'u8[851968]{0}', space=vmem, size = 0xd0000, scoped, tag = 'input window, operand 4, single buffered']
    #allocation12 [shape = 'u8[196608]{0}', space=vmem, size = 0x30000, scoped, tag = 'input window, operand 6, single buffered']
    #allocation13 [shape = 's32[1]{0}', space=sflag, size = 0x4, scoped, tag = 'scoped memory for decoder_cada_forward.1']
    #allocation14 [shape = 'u8[512]{0}', space=vmem, size = 0x400, scoped, tag = 'input window, operand 7, single buffered']
    #allocation15 [shape = 'u8[8192]{0}', space=vmem, size = 0x2000, scoped, tag = 'output window, operand 0, single buffered']
    #allocation16 [shape = 'u8[4096]{0}', space=vmem, size = 0x1000, scoped, tag = 'output window, operand 1, single buffered']
    #allocation17 [shape = 's32[1]{0}', space=sflag, size = 0x4, scoped, tag = 'scoped memory for decoder_cada_forward.1']
    #allocation18 [shape = 'u8[4096]{0}', space=vmem, size = 0x1000, scoped, tag = 'output window, operand 2, single buffered']
    #allocation19 [shape = 'u8[8192]{0}', space=vmem, size = 0x2000, scoped, tag = 'output window, operand 3, single buffered']
    #allocation20 [shape = 's32[1]{0}', space=sflag, size = 0x4, scoped, tag = 'scoped memory for decoder_cada_forward.1']
    %17 = vsyncpa [#allocation4], 0
    %18 = vsyncpa [#allocation7], 0
    %19 = vsyncpa [#allocation10], 0
    %20 = vsyncpa [#allocation13], 0
    %21 = vsyncpa [#allocation5], 0
    %22 = vsyncpa [#allocation17], 0
    %23 = vsyncpa [#allocation20], 0
    // Predicated region
    $region2: #{decoder_cada_forward.1} parent=1 // pred_check
      _
    $region3: #{decoder_cada_forward.1} parent=1 // pred_check_branch
      %25 = sbr.rel (0) target = $region5
    $region4: #{decoder_cada_forward.1} parent=1 // pred_region
      %27 = vsyncadd [#allocation4], 0
      %s29 = sshll.u32 %s0, 4
      %s30 = int_to_ptr.hbm [resolvable:$true] %s29
      %s31 = sshll.u32 [#allocation3], 4
      %s32 = int_to_ptr.vmem [resolvable:$true] %s31
      %34 = dma.hbm_to_vmem [thread:$0]  %s30, 128, %s32, [#allocation4]
    $region5: #{decoder_cada_forward.1} parent=1 // pred_fallthru
      _
    // Predicated region
    $region6: #{decoder_cada_forward.1} parent=1 // pred_check
      _
    $region7: #{decoder_cada_forward.1} parent=1 // pred_check_branch
      %36 = sbr.rel (0) target = $region9
    $region8: #{decoder_cada_forward.1} parent=1 // pred_region
      %38 = vsyncadd [#allocation7], 0
      %s40 = sshll.u32 %s1, 4
      %s41 = int_to_ptr.hbm [resolvable:$true] %s40
      %s42 = sshll.u32 [#allocation6], 4
      %s43 = int_to_ptr.vmem [resolvable:$true] %s42
      %45 = dma.hbm_to_vmem [thread:$0]  %s41, 128, %s43, [#allocation7]
    $region9: #{decoder_cada_forward.1} parent=1 // pred_fallthru
      _
    // Predicated region
    $region10: #{decoder_cada_forward.1} parent=1 // pred_check
      _
    $region11: #{decoder_cada_forward.1} parent=1 // pred_check_branch
      %47 = sbr.rel (0) target = $region13
    $region12: #{decoder_cada_forward.1} parent=1 // pred_region
      %49 = vsyncadd [#allocation7], 0
      %s50 = sshll.u32 %s2, 4
      %s51 = int_to_ptr.hbm [resolvable:$true] %s50
      %s52 = sshll.u32 [#allocation8], 4
      %s53 = int_to_ptr.vmem [resolvable:$true] %s52
      %58 = dma.hbm_to_vmem [thread:$0]  %s51, 9728, %s53, [#allocation7], 1216, 1216, 76
    $region13: #{decoder_cada_forward.1} parent=1 // pred_fallthru
      _
    // Predicated region
    $region14: #{decoder_cada_forward.1} parent=1 // pred_check
      _
    $region15: #{decoder_cada_forward.1} parent=1 // pred_check_branch
      %60 = sbr.rel (0) target = $region17
    $region16: #{decoder_cada_forward.1} parent=1 // pred_region
      %62 = vsyncadd [#allocation10], 0
      %s64 = sshll.u32 %s3, 4
      %s65 = int_to_ptr.hbm [resolvable:$true] %s64
      %s66 = sshll.u32 [#allocation9], 4
      %s67 = int_to_ptr.vmem [resolvable:$true] %s66
      %69 = dma.hbm_to_vmem [thread:$0]  %s65, 304, %s67, [#allocation10]
    $region17: #{decoder_cada_forward.1} parent=1 // pred_fallthru
      _
    // Predicated region
    $region18: #{decoder_cada_forward.1} parent=1 // pred_check
      _
    $region19: #{decoder_cada_forward.1} parent=1 // pred_check_branch
      %71 = sbr.rel (0) target = $region21
    $region20: #{decoder_cada_forward.1} parent=1 // pred_region
      %73 = vsyncadd [#allocation10], 0
      %s74 = sshll.u32 %s4, 4
      %s75 = int_to_ptr.hbm [resolvable:$true] %s74
      %s76 = sshll.u32 [#allocation11], 4
      %s77 = int_to_ptr.vmem [resolvable:$true] %s76
      %82 = dma.hbm_to_vmem [thread:$0]  %s75, 26624, %s77, [#allocation10], 128, 128, 8
    $region21: #{decoder_cada_forward.1} parent=1 // pred_fallthru
      _
    // Predicated region
    $region22: #{decoder_cada_forward.1} parent=1 // pred_check
      _
    $region23: #{decoder_cada_forward.1} parent=1 // pred_check_branch
      %84 = sbr.rel (0) target = $region25
    $region24: #{decoder_cada_forward.1} parent=1 // pred_region
      _
    $region25: #{decoder_cada_forward.1} parent=1 // pred_fallthru
      _
    // Predicated region
    $region26: #{decoder_cada_forward.1} parent=1 // pred_check
      _
    $region27: #{decoder_cada_forward.1} parent=1 // pred_check_branch
      %86 = sbr.rel (0) target = $region29
    $region28: #{decoder_cada_forward.1} parent=1 // pred_region
      %88 = vsyncadd [#allocation13], 0
      %s89 = sshll.u32 %s6, 4
      %s90 = int_to_ptr.hbm [resolvable:$true] %s89
      %s91 = sshll.u32 [#allocation12], 4
      %s92 = int_to_ptr.vmem [resolvable:$true] %s91
      %97 = dma.hbm_to_vmem [thread:$0]  %s90, 6144, %s92, [#allocation13], 64, 64, 4
    $region29: #{decoder_cada_forward.1} parent=1 // pred_fallthru
      _
    // Predicated region
    $region30: #{decoder_cada_forward.1} parent=1 // pred_check
      _
    $region31: #{decoder_cada_forward.1} parent=1 // pred_check_branch
      %99 = sbr.rel (0) target = $region33
    $region32: #{decoder_cada_forward.1} parent=1 // pred_region
      %101 = vsyncadd [#allocation13], 0
      %s103 = sshll.u32 %s7, 4
      %s104 = int_to_ptr.hbm [resolvable:$true] %s103
      %s105 = sshll.u32 [#allocation14], 4
      %s106 = int_to_ptr.vmem [resolvable:$true] %s105
      %108 = dma.hbm_to_vmem [thread:$0]  %s104, 16, %s106, [#allocation13]
    $region33: #{decoder_cada_forward.1} parent=1 // pred_fallthru
      _
    // Predicated region
    $region34: #{decoder_cada_forward.1} parent=1 // pred_check
      _
    $region35: #{decoder_cada_forward.1} parent=1 // pred_check_branch
      %110 = sbr.rel (0) target = $region37
    $region36: #{decoder_cada_forward.1} parent=1 // pred_region
      %112 = dma.done [#allocation4], 128
    $region37: #{decoder_cada_forward.1} parent=1 // pred_fallthru
      _
    // Predicated region
    $region38: #{decoder_cada_forward.1} parent=1 // pred_check
      _
    $region39: #{decoder_cada_forward.1} parent=1 // pred_check_branch
      %114 = sbr.rel (0) target = $region41
    $region40: #{decoder_cada_forward.1} parent=1 // pred_region
      %116 = dma.done [#allocation7], 128
    $region41: #{decoder_cada_forward.1} parent=1 // pred_fallthru
      _
    // Predicated region
    $region42: #{decoder_cada_forward.1} parent=1 // pred_check
      _
    $region43: #{decoder_cada_forward.1} parent=1 // pred_check_branch
      %118 = sbr.rel (0) target = $region45
    $region44: #{decoder_cada_forward.1} parent=1 // pred_region
      %120 = dma.done [#allocation7], 9728
    $region45: #{decoder_cada_forward.1} parent=1 // pred_fallthru
      _
    // Predicated region
    $region46: #{decoder_cada_forward.1} parent=1 // pred_check
      _
    $region47: #{decoder_cada_forward.1} parent=1 // pred_check_branch
      %122 = sbr.rel (0) target = $region49
    $region48: #{decoder_cada_forward.1} parent=1 // pred_region
      %124 = dma.done [#allocation10], 304
    $region49: #{decoder_cada_forward.1} parent=1 // pred_fallthru
      _
    // Predicated region
    $region50: #{decoder_cada_forward.1} parent=1 // pred_check
      _
    $region51: #{decoder_cada_forward.1} parent=1 // pred_check_branch
      %126 = sbr.rel (0) target = $region53
    $region52: #{decoder_cada_forward.1} parent=1 // pred_region
      %128 = dma.done [#allocation10], 26624
    $region53: #{decoder_cada_forward.1} parent=1 // pred_fallthru
      _
    // Predicated region
    $region54: #{decoder_cada_forward.1} parent=1 // pred_check
      _
    $region55: #{decoder_cada_forward.1} parent=1 // pred_check_branch
      %130 = sbr.rel (0) target = $region57
    $region56: #{decoder_cada_forward.1} parent=1 // pred_region
      %132 = dma.done [#allocation13], 6144
    $region57: #{decoder_cada_forward.1} parent=1 // pred_fallthru
      _
    // Predicated region
    $region58: #{decoder_cada_forward.1} parent=1 // pred_check
      _
    $region59: #{decoder_cada_forward.1} parent=1 // pred_check_branch
      %134 = sbr.rel (0) target = $region61
    $region60: #{decoder_cada_forward.1} parent=1 // pred_region
      %136 = dma.done [#allocation13], 16
    $region61: #{decoder_cada_forward.1} parent=1 // pred_fallthru
      _
    %v138 = vld [vmem:[#allocation3] sm:$0xff]
    %v139 = vpack.c.bf16 %v138, %v138
    %vm140 = vcmask 519168
    %141 = vst.msk [vmem:[#allocation2] sm:$0xf] %vm140, %v139
    %v142 = vld [vmem:[#allocation6] sm:$0xff]
    %v143 = vpack.c.bf16 %v142, %v142
    %144 = vst.msk [vmem:[#allocation2 + $0x4] sm:$0xf] %vm140, %v143
    %v145 = vld [vmem:[#allocation2] sm:$0xf]
    %v146 = vld [vmem:[#allocation2 + $0x4] sm:$0xf]
    %v147 = vld [vmem:[#allocation8] sm:$0xff]
    %v148 = vld [vmem:[#allocation8 + $0x8] sm:$0xff]
    %v149 = vld [vmem:[#allocation8 + $0x10] sm:$0xff]
    %v150 = vld [vmem:[#allocation8 + $0x18] sm:$0xff]
    %v151 = vld [vmem:[#allocation8 + $0x20] sm:$0xff]
    %v152 = vld [vmem:[#allocation8 + $0x28] sm:$0xff]
    %v153 = vld [vmem:[#allocation8 + $0x30] sm:$0xff]
    %v154 = vld [vmem:[#allocation8 + $0x38] sm:$0xff]
    %v155 = vld [vmem:[#allocation8 + $0x40] sm:$0xff]
    %v156 = vld [vmem:[#allocation8 + $0x48] sm:$0xf]
    %v157 = vld [vmem:[#allocation8 + $0x4c] sm:$0xff]
    %v158 = vld [vmem:[#allocation8 + $0x54] sm:$0xff]
    %v159 = vld [vmem:[#allocation8 + $0x5c] sm:$0xff]
    %v160 = vld [vmem:[#allocation8 + $0x64] sm:$0xff]
    %v161 = vld [vmem:[#allocation8 + $0x6c] sm:$0xff]
    %v162 = vld [vmem:[#allocation8 + $0x74] sm:$0xff]
    %v163 = vld [vmem:[#allocation8 + $0x7c] sm:$0xff]
    %v164 = vld [vmem:[#allocation8 + $0x84] sm:$0xff]
    %v165 = vld [vmem:[#allocation8 + $0x8c] sm:$0xff]
    %v166 = vld [vmem:[#allocation8 + $0x94] sm:$0xf]
    %v167 = vld [vmem:[#allocation8 + $0x98] sm:$0xff]
    %v168 = vld [vmem:[#allocation8 + $0xa0] sm:$0xff]
    %v169 = vld [vmem:[#allocation8 + $0xa8] sm:$0xff]
    %v170 = vld [vmem:[#allocation8 + $0xb0] sm:$0xff]
    %v171 = vld [vmem:[#allocation8 + $0xb8] sm:$0xff]
    %v172 = vld [vmem:[#allocation8 + $0xc0] sm:$0xff]
    %v173 = vld [vmem:[#allocation8 + $0xc8] sm:$0xff]
    %v174 = vld [vmem:[#allocation8 + $0xd0] sm:$0xff]
    %v175 = vld [vmem:[#allocation8 + $0xd8] sm:$0xff]
    %v176 = vld [vmem:[#allocation8 + $0xe0] sm:$0xf]
    %v177 = vld [vmem:[#allocation8 + $0xe4] sm:$0xff]
    %v178 = vld [vmem:[#allocation8 + $0xec] sm:$0xff]
    %v179 = vld [vmem:[#allocation8 + $0xf4] sm:$0xff]
    %v180 = vld [vmem:[#allocation8 + $0xfc] sm:$0xff]
    %v181 = vld [vmem:[#allocation8 + $0x104] sm:$0xff]
    %v182 = vld [vmem:[#allocation8 + $0x10c] sm:$0xff]
    %v183 = vld [vmem:[#allocation8 + $0x114] sm:$0xff]
    %v184 = vld [vmem:[#allocation8 + $0x11c] sm:$0xff]
    %v185 = vld [vmem:[#allocation8 + $0x124] sm:$0xff]
    %v186 = vld [vmem:[#allocation8 + $0x12c] sm:$0xf]
    %v187 = vld [vmem:[#allocation8 + $0x130] sm:$0xff]
    %v188 = vld [vmem:[#allocation8 + $0x138] sm:$0xff]
    %v189 = vld [vmem:[#allocation8 + $0x140] sm:$0xff]
    %v190 = vld [vmem:[#allocation8 + $0x148] sm:$0xff]
    %v191 = vld [vmem:[#allocation8 + $0x150] sm:$0xff]
    %v192 = vld [vmem:[#allocation8 + $0x158] sm:$0xff]
    %v193 = vld [vmem:[#allocation8 + $0x160] sm:$0xff]
    %v194 = vld [vmem:[#allocation8 + $0x168] sm:$0xff]
    %v195 = vld [vmem:[#allocation8 + $0x170] sm:$0xff]
    %v196 = vld [vmem:[#allocation8 + $0x178] sm:$0xf]
    %v197 = vld [vmem:[#allocation8 + $0x17c] sm:$0xff]
    %v198 = vld [vmem:[#allocation8 + $0x184] sm:$0xff]
    %v199 = vld [vmem:[#allocation8 + $0x18c] sm:$0xff]
    %v200 = vld [vmem:[#allocation8 + $0x194] sm:$0xff]
    %v201 = vld [vmem:[#allocation8 + $0x19c] sm:$0xff]
    %v202 = vld [vmem:[#allocation8 + $0x1a4] sm:$0xff]
    %v203 = vld [vmem:[#allocation8 + $0x1ac] sm:$0xff]
    %v204 = vld [vmem:[#allocation8 + $0x1b4] sm:$0xff]
    %v205 = vld [vmem:[#allocation8 + $0x1bc] sm:$0xff]
    %v206 = vld [vmem:[#allocation8 + $0x1c4] sm:$0xf]
    %v207 = vld [vmem:[#allocation8 + $0x1c8] sm:$0xff]
    %v208 = vld [vmem:[#allocation8 + $0x1d0] sm:$0xff]
    %v209 = vld [vmem:[#allocation8 + $0x1d8] sm:$0xff]
    %v210 = vld [vmem:[#allocation8 + $0x1e0] sm:$0xff]
    %v211 = vld [vmem:[#allocation8 + $0x1e8] sm:$0xff]
    %v212 = vld [vmem:[#allocation8 + $0x1f0] sm:$0xff]
    %v213 = vld [vmem:[#allocation8 + $0x1f8] sm:$0xff]
    %v214 = vld [vmem:[#allocation8 + $0x200] sm:$0xff]
    %v215 = vld [vmem:[#allocation8 + $0x208] sm:$0xff]
    %v216 = vld [vmem:[#allocation8 + $0x210] sm:$0xf]
    %v217 = vld [vmem:[#allocation8 + $0x214] sm:$0xff]
    %v218 = vld [vmem:[#allocation8 + $0x21c] sm:$0xff]
    %v219 = vld [vmem:[#allocation8 + $0x224] sm:$0xff]
    %v220 = vld [vmem:[#allocation8 + $0x22c] sm:$0xff]
    %v221 = vld [vmem:[#allocation8 + $0x234] sm:$0xff]
    %v222 = vld [vmem:[#allocation8 + $0x23c] sm:$0xff]
    %v223 = vld [vmem:[#allocation8 + $0x244] sm:$0xff]
    %v224 = vld [vmem:[#allocation8 + $0x24c] sm:$0xff]
    %v225 = vld [vmem:[#allocation8 + $0x254] sm:$0xff]
    %v226 = vld [vmem:[#allocation8 + $0x25c] sm:$0xf]
    %v227 = vld [vmem:[#allocation9] sm:$0xff]
    %v228 = vld [vmem:[#allocation9 + $0x8] sm:$0xff]
    %v229 = vld [vmem:[#allocation9 + $0x10] sm:$0x7]
    %v233 = vperm.slane %v227, 0
    %v234 = vperm.slane %v227, 1
    %v235 = vperm.slane %v227, 2
    %v236 = vperm.slane %v227, 3
    %v237 = vperm.slane %v227, 4
    %v238 = vperm.slane %v227, 5
    %v239 = vperm.slane %v227, 6
    %v240 = vperm.slane %v227, 7
    %v241 = vperm.slane %v228, 0
    %v242 = vperm.slane %v228, 1
    %v243 = vperm.slane %v228, 2
    %v244 = vperm.slane %v228, 3
    %v245 = vperm.slane %v228, 4
    %v246 = vperm.slane %v228, 5
    %v247 = vperm.slane %v228, 6
    %v248 = vperm.slane %v228, 7
    %v249 = vperm.slane %v229, 0
    %v250 = vperm.slane %v229, 1
    %v251 = vperm.slane %v229, 2
    %v273 = vunpack.c.l.b16 %v145
    %v274 = vunpack.c.l.b16 %v146
    %v275 = vpack.c.b16 %v274, %v273
    %v356 = vunpack.c.l.b16 %v147
    %v357 = vunpack.c.h.b16 %v147
    %v358 = vunpack.c.l.b16 %v148
    %v359 = vunpack.c.h.b16 %v148
    %v360 = vunpack.c.l.b16 %v149
    %v361 = vunpack.c.h.b16 %v149
    %v362 = vunpack.c.l.b16 %v150
    %v363 = vunpack.c.h.b16 %v150
    %v364 = vunpack.c.l.b16 %v151
    %v365 = vunpack.c.h.b16 %v151
    %v366 = vunpack.c.l.b16 %v152
    %v367 = vunpack.c.h.b16 %v152
    %v368 = vunpack.c.l.b16 %v153
    %v369 = vunpack.c.h.b16 %v153
    %v370 = vunpack.c.l.b16 %v154
    %v371 = vunpack.c.h.b16 %v154
    %v372 = vunpack.c.l.b16 %v155
    %v373 = vunpack.c.h.b16 %v155
    %v374 = vunpack.c.l.b16 %v156
    %v375 = vunpack.c.l.b16 %v157
    %v376 = vunpack.c.h.b16 %v157
    %v377 = vunpack.c.l.b16 %v158
    %v378 = vunpack.c.h.b16 %v158
    %v379 = vunpack.c.l.b16 %v159
    %v380 = vunpack.c.h.b16 %v159
    %v381 = vunpack.c.l.b16 %v160
    %v382 = vunpack.c.h.b16 %v160
    %v383 = vunpack.c.l.b16 %v161
    %v384 = vunpack.c.h.b16 %v161
    %v385 = vunpack.c.l.b16 %v162
    %v386 = vunpack.c.h.b16 %v162
    %v387 = vunpack.c.l.b16 %v163
    %v388 = vunpack.c.h.b16 %v163
    %v389 = vunpack.c.l.b16 %v164
    %v390 = vunpack.c.h.b16 %v164
    %v391 = vunpack.c.l.b16 %v165
    %v392 = vunpack.c.h.b16 %v165
    %v393 = vunpack.c.l.b16 %v166
    %v394 = vunpack.c.l.b16 %v167
    %v395 = vunpack.c.h.b16 %v167
    %v396 = vunpack.c.l.b16 %v168
    %v397 = vunpack.c.h.b16 %v168
    %v398 = vunpack.c.l.b16 %v169
    %v399 = vunpack.c.h.b16 %v169
    %v400 = vunpack.c.l.b16 %v170
    %v401 = vunpack.c.h.b16 %v170
    %v402 = vunpack.c.l.b16 %v171
    %v403 = vunpack.c.h.b16 %v171
    %v404 = vunpack.c.l.b16 %v172
    %v405 = vunpack.c.h.b16 %v172
    %v406 = vunpack.c.l.b16 %v173
    %v407 = vunpack.c.h.b16 %v173
    %v408 = vunpack.c.l.b16 %v174
    %v409 = vunpack.c.h.b16 %v174
    %v410 = vunpack.c.l.b16 %v175
    %v411 = vunpack.c.h.b16 %v175
    %v412 = vunpack.c.l.b16 %v176
    %v413 = vunpack.c.l.b16 %v177
    %v414 = vunpack.c.h.b16 %v177
    %v415 = vunpack.c.l.b16 %v178
    %v416 = vunpack.c.h.b16 %v178
    %v417 = vunpack.c.l.b16 %v179
    %v418 = vunpack.c.h.b16 %v179
    %v419 = vunpack.c.l.b16 %v180
    %v420 = vunpack.c.h.b16 %v180
    %v421 = vunpack.c.l.b16 %v181
    %v422 = vunpack.c.h.b16 %v181
    %v423 = vunpack.c.l.b16 %v182
    %v424 = vunpack.c.h.b16 %v182
    %v425 = vunpack.c.l.b16 %v183
    %v426 = vunpack.c.h.b16 %v183
    %v427 = vunpack.c.l.b16 %v184
    %v428 = vunpack.c.h.b16 %v184
    %v429 = vunpack.c.l.b16 %v185
    %v430 = vunpack.c.h.b16 %v185
    %v431 = vunpack.c.l.b16 %v186
    %v432 = vunpack.c.l.b16 %v187
    %v433 = vunpack.c.h.b16 %v187
    %v434 = vunpack.c.l.b16 %v188
    %v435 = vunpack.c.h.b16 %v188
    %v436 = vunpack.c.l.b16 %v189
    %v437 = vunpack.c.h.b16 %v189
    %v438 = vunpack.c.l.b16 %v190
    %v439 = vunpack.c.h.b16 %v190
    %v440 = vunpack.c.l.b16 %v191
    %v441 = vunpack.c.h.b16 %v191
    %v442 = vunpack.c.l.b16 %v192
    %v443 = vunpack.c.h.b16 %v192
    %v444 = vunpack.c.l.b16 %v193
    %v445 = vunpack.c.h.b16 %v193
    %v446 = vunpack.c.l.b16 %v194
    %v447 = vunpack.c.h.b16 %v194
    %v448 = vunpack.c.l.b16 %v195
    %v449 = vunpack.c.h.b16 %v195
    %v450 = vunpack.c.l.b16 %v196
    %v451 = vunpack.c.l.b16 %v197
    %v452 = vunpack.c.h.b16 %v197
    %v453 = vunpack.c.l.b16 %v198
    %v454 = vunpack.c.h.b16 %v198
    %v455 = vunpack.c.l.b16 %v199
    %v456 = vunpack.c.h.b16 %v199
    %v457 = vunpack.c.l.b16 %v200
    %v458 = vunpack.c.h.b16 %v200
    %v459 = vunpack.c.l.b16 %v201
    %v460 = vunpack.c.h.b16 %v201
    %v461 = vunpack.c.l.b16 %v202
    %v462 = vunpack.c.h.b16 %v202
    %v463 = vunpack.c.l.b16 %v203
    %v464 = vunpack.c.h.b16 %v203
    %v465 = vunpack.c.l.b16 %v204
    %v466 = vunpack.c.h.b16 %v204
    %v467 = vunpack.c.l.b16 %v205
    %v468 = vunpack.c.h.b16 %v205
    %v469 = vunpack.c.l.b16 %v206
    %v470 = vunpack.c.l.b16 %v207
    %v471 = vunpack.c.h.b16 %v207
    %v472 = vunpack.c.l.b16 %v208
    %v473 = vunpack.c.h.b16 %v208
    %v474 = vunpack.c.l.b16 %v209
    %v475 = vunpack.c.h.b16 %v209
    %v476 = vunpack.c.l.b16 %v210
    %v477 = vunpack.c.h.b16 %v210
    %v478 = vunpack.c.l.b16 %v211
    %v479 = vunpack.c.h.b16 %v211
    %v480 = vunpack.c.l.b16 %v212
    %v481 = vunpack.c.h.b16 %v212
    %v482 = vunpack.c.l.b16 %v213
    %v483 = vunpack.c.h.b16 %v213
    %v484 = vunpack.c.l.b16 %v214
    %v485 = vunpack.c.h.b16 %v214
    %v486 = vunpack.c.l.b16 %v215
    %v487 = vunpack.c.h.b16 %v215
    %v488 = vunpack.c.l.b16 %v216
    %v489 = vunpack.c.l.b16 %v217
    %v490 = vunpack.c.h.b16 %v217
    %v491 = vunpack.c.l.b16 %v218
    %v492 = vunpack.c.h.b16 %v218
    %v493 = vunpack.c.l.b16 %v219
    %v494 = vunpack.c.h.b16 %v219
    %v495 = vunpack.c.l.b16 %v220
    %v496 = vunpack.c.h.b16 %v220
    %v497 = vunpack.c.l.b16 %v221
    %v498 = vunpack.c.h.b16 %v221
    %v499 = vunpack.c.l.b16 %v222
    %v500 = vunpack.c.h.b16 %v222
    %v501 = vunpack.c.l.b16 %v223
    %v502 = vunpack.c.h.b16 %v223
    %v503 = vunpack.c.l.b16 %v224
    %v504 = vunpack.c.h.b16 %v224
    %v505 = vunpack.c.l.b16 %v225
    %v506 = vunpack.c.h.b16 %v225
    %v507 = vunpack.c.l.b16 %v226
    %v508 = vpack.c.b16 %v375, %v356
    %v509 = vpack.c.b16 %v376, %v357
    %v510 = vpack.c.b16 %v377, %v358
    %v511 = vpack.c.b16 %v378, %v359
    %v512 = vpack.c.b16 %v379, %v360
    %v513 = vpack.c.b16 %v380, %v361
    %v514 = vpack.c.b16 %v381, %v362
    %v515 = vpack.c.b16 %v382, %v363
    %v516 = vpack.c.b16 %v383, %v364
    %v517 = vpack.c.b16 %v384, %v365
    %v518 = vpack.c.b16 %v385, %v366
    %v519 = vpack.c.b16 %v386, %v367
    %v520 = vpack.c.b16 %v387, %v368
    %v521 = vpack.c.b16 %v388, %v369
    %v522 = vpack.c.b16 %v389, %v370
    %v523 = vpack.c.b16 %v390, %v371
    %v524 = vpack.c.b16 %v391, %v372
    %v525 = vpack.c.b16 %v392, %v373
    %v526 = vpack.c.b16 %v393, %v374
    %v527 = vpack.c.b16 %v413, %v394
    %v528 = vpack.c.b16 %v414, %v395
    %v529 = vpack.c.b16 %v415, %v396
    %v530 = vpack.c.b16 %v416, %v397
    %v531 = vpack.c.b16 %v417, %v398
    %v532 = vpack.c.b16 %v418, %v399
    %v533 = vpack.c.b16 %v419, %v400
    %v534 = vpack.c.b16 %v420, %v401
    %v535 = vpack.c.b16 %v421, %v402
    %v536 = vpack.c.b16 %v422, %v403
    %v537 = vpack.c.b16 %v423, %v404
    %v538 = vpack.c.b16 %v424, %v405
    %v539 = vpack.c.b16 %v425, %v406
    %v540 = vpack.c.b16 %v426, %v407
    %v541 = vpack.c.b16 %v427, %v408
    %v542 = vpack.c.b16 %v428, %v409
    %v543 = vpack.c.b16 %v429, %v410
    %v544 = vpack.c.b16 %v430, %v411
    %v545 = vpack.c.b16 %v431, %v412
    %v546 = vpack.c.b16 %v451, %v432
    %v547 = vpack.c.b16 %v452, %v433
    %v548 = vpack.c.b16 %v453, %v434
    %v549 = vpack.c.b16 %v454, %v435
    %v550 = vpack.c.b16 %v455, %v436
    %v551 = vpack.c.b16 %v456, %v437
    %v552 = vpack.c.b16 %v457, %v438
    %v553 = vpack.c.b16 %v458, %v439
    %v554 = vpack.c.b16 %v459, %v440
    %v555 = vpack.c.b16 %v460, %v441
    %v556 = vpack.c.b16 %v461, %v442
    %v557 = vpack.c.b16 %v462, %v443
    %v558 = vpack.c.b16 %v463, %v444
    %v559 = vpack.c.b16 %v464, %v445
    %v560 = vpack.c.b16 %v465, %v446
    %v561 = vpack.c.b16 %v466, %v447
    %v562 = vpack.c.b16 %v467, %v448
    %v563 = vpack.c.b16 %v468, %v449
    %v564 = vpack.c.b16 %v469, %v450
    %v565 = vpack.c.b16 %v489, %v470
    %v566 = vpack.c.b16 %v490, %v471
    %v567 = vpack.c.b16 %v491, %v472
    %v568 = vpack.c.b16 %v492, %v473
    %v569 = vpack.c.b16 %v493, %v474
    %v570 = vpack.c.b16 %v494, %v475
    %v571 = vpack.c.b16 %v495, %v476
    %v572 = vpack.c.b16 %v496, %v477
    %v573 = vpack.c.b16 %v497, %v478
    %v574 = vpack.c.b16 %v498, %v479
    %v575 = vpack.c.b16 %v499, %v480
    %v576 = vpack.c.b16 %v500, %v481
    %v577 = vpack.c.b16 %v501, %v482
    %v578 = vpack.c.b16 %v502, %v483
    %v579 = vpack.c.b16 %v503, %v484
    %v580 = vpack.c.b16 %v504, %v485
    %v581 = vpack.c.b16 %v505, %v486
    %v582 = vpack.c.b16 %v506, %v487
    %v583 = vpack.c.b16 %v507, %v488
    %vm660 = vcmask 523264
    %v662 = vsel %vm660, %v275, 0
    %664 = vmatpush.bf16.msra.mxu0 0
    %665 = vmatpush.bf16.msra.mxu0 0
    %666 = vmatpush.bf16.msra.mxu0 0
    %667 = vmatpush.bf16.msra.mxu0 0
    %668 = vmatpush.bf16.msra.mxu0 %v565
    %669 = vmatpush.bf16.msra.mxu0 %v546
    %670 = vmatpush.bf16.msra.mxu0 %v527
    %671 = vmatpush.bf16.msra.mxu0 %v508
    %672 = vmatmul.bf16.gmra.mxu0 %v662
    %v673 = vpop.f32.mrf.mxu0
    %v674 = vadd.f32 %v233, %v673
    %v675 = vpop.f32.mrf.mxu0
    %v676 = vadd.f32 %v233, %v675
    %677 = vdwg.mxu0
    %678 = vmatpush.bf16.msra.mxu0 0
    %679 = vmatpush.bf16.msra.mxu0 0
    %680 = vmatpush.bf16.msra.mxu0 0
    %681 = vmatpush.bf16.msra.mxu0 0
    %682 = vmatpush.bf16.msra.mxu0 %v566
    %683 = vmatpush.bf16.msra.mxu0 %v547
    %684 = vmatpush.bf16.msra.mxu0 %v528
    %685 = vmatpush.bf16.msra.mxu0 %v509
    %686 = vmatmul.bf16.gmra.mxu0 %v662
    %v687 = vpop.f32.mrf.mxu0
    %v688 = vadd.f32 %v234, %v687
    %v689 = vpop.f32.mrf.mxu0
    %v690 = vadd.f32 %v234, %v689
    %691 = vdwg.mxu0
    %692 = vmatpush.bf16.msra.mxu0 0
    %693 = vmatpush.bf16.msra.mxu0 0
    %694 = vmatpush.bf16.msra.mxu0 0
    %695 = vmatpush.bf16.msra.mxu0 0
    %696 = vmatpush.bf16.msra.mxu0 %v567
    %697 = vmatpush.bf16.msra.mxu0 %v548
    %698 = vmatpush.bf16.msra.mxu0 %v529
    %699 = vmatpush.bf16.msra.mxu0 %v510
    %700 = vmatmul.bf16.gmra.mxu0 %v662
    %v701 = vpop.f32.mrf.mxu0
    %v702 = vadd.f32 %v235, %v701
    %v703 = vpop.f32.mrf.mxu0
    %v704 = vadd.f32 %v235, %v703
    %705 = vdwg.mxu0
    %706 = vmatpush.bf16.msra.mxu0 0
    %707 = vmatpush.bf16.msra.mxu0 0
    %708 = vmatpush.bf16.msra.mxu0 0
    %709 = vmatpush.bf16.msra.mxu0 0
    %710 = vmatpush.bf16.msra.mxu0 %v568
    %711 = vmatpush.bf16.msra.mxu0 %v549
    %712 = vmatpush.bf16.msra.mxu0 %v530
    %713 = vmatpush.bf16.msra.mxu0 %v511
    %714 = vmatmul.bf16.gmra.mxu0 %v662
    %v715 = vpop.f32.mrf.mxu0
    %v716 = vadd.f32 %v236, %v715
    %v717 = vpop.f32.mrf.mxu0
    %v718 = vadd.f32 %v236, %v717
    %719 = vdwg.mxu0
    %720 = vmatpush.bf16.msra.mxu0 0
    %721 = vmatpush.bf16.msra.mxu0 0
    %722 = vmatpush.bf16.msra.mxu0 0
    %723 = vmatpush.bf16.msra.mxu0 0
    %724 = vmatpush.bf16.msra.mxu0 %v569
    %725 = vmatpush.bf16.msra.mxu0 %v550
    %726 = vmatpush.bf16.msra.mxu0 %v531
    %727 = vmatpush.bf16.msra.mxu0 %v512
    %728 = vmatmul.bf16.gmra.mxu0 %v662
    %v729 = vpop.f32.mrf.mxu0
    %v730 = vadd.f32 %v237, %v729
    %v731 = vpop.f32.mrf.mxu0
    %v732 = vadd.f32 %v237, %v731
    %733 = vdwg.mxu0
    %734 = vmatpush.bf16.msra.mxu0 0
    %735 = vmatpush.bf16.msra.mxu0 0
    %736 = vmatpush.bf16.msra.mxu0 0
    %737 = vmatpush.bf16.msra.mxu0 0
    %738 = vmatpush.bf16.msra.mxu0 %v570
    %739 = vmatpush.bf16.msra.mxu0 %v551
    %740 = vmatpush.bf16.msra.mxu0 %v532
    %741 = vmatpush.bf16.msra.mxu0 %v513
    %742 = vmatmul.bf16.gmra.mxu0 %v662
    %v743 = vpop.f32.mrf.mxu0
    %v744 = vadd.f32 %v238, %v743
    %v745 = vpop.f32.mrf.mxu0
    %v746 = vadd.f32 %v238, %v745
    %747 = vdwg.mxu0
    %748 = vmatpush.bf16.msra.mxu0 0
    %749 = vmatpush.bf16.msra.mxu0 0
    %750 = vmatpush.bf16.msra.mxu0 0
    %751 = vmatpush.bf16.msra.mxu0 0
    %752 = vmatpush.bf16.msra.mxu0 %v571
    %753 = vmatpush.bf16.msra.mxu0 %v552
    %754 = vmatpush.bf16.msra.mxu0 %v533
    %755 = vmatpush.bf16.msra.mxu0 %v514
    %756 = vmatmul.bf16.gmra.mxu0 %v662
    %v757 = vpop.f32.mrf.mxu0
    %v758 = vadd.f32 %v239, %v757
    %v759 = vpop.f32.mrf.mxu0
    %v760 = vadd.f32 %v239, %v759
    %761 = vdwg.mxu0
    %762 = vmatpush.bf16.msra.mxu0 0
    %763 = vmatpush.bf16.msra.mxu0 0
    %764 = vmatpush.bf16.msra.mxu0 0
    %765 = vmatpush.bf16.msra.mxu0 0
    %766 = vmatpush.bf16.msra.mxu0 %v572
    %767 = vmatpush.bf16.msra.mxu0 %v553
    %768 = vmatpush.bf16.msra.mxu0 %v534
    %769 = vmatpush.bf16.msra.mxu0 %v515
    %770 = vmatmul.bf16.gmra.mxu0 %v662
    %v771 = vpop.f32.mrf.mxu0
    %v772 = vadd.f32 %v240, %v771
    %v773 = vpop.f32.mrf.mxu0
    %v774 = vadd.f32 %v240, %v773
    %775 = vdwg.mxu0
    %776 = vmatpush.bf16.msra.mxu0 0
    %777 = vmatpush.bf16.msra.mxu0 0
    %778 = vmatpush.bf16.msra.mxu0 0
    %779 = vmatpush.bf16.msra.mxu0 0
    %780 = vmatpush.bf16.msra.mxu0 %v573
    %781 = vmatpush.bf16.msra.mxu0 %v554
    %782 = vmatpush.bf16.msra.mxu0 %v535
    %783 = vmatpush.bf16.msra.mxu0 %v516
    %784 = vmatmul.bf16.gmra.mxu0 %v662
    %v785 = vpop.f32.mrf.mxu0
    %v786 = vadd.f32 %v241, %v785
    %v787 = vpop.f32.mrf.mxu0
    %v788 = vadd.f32 %v241, %v787
    %789 = vdwg.mxu0
    %790 = vmatpush.bf16.msra.mxu0 0
    %791 = vmatpush.bf16.msra.mxu0 0
    %792 = vmatpush.bf16.msra.mxu0 0
    %793 = vmatpush.bf16.msra.mxu0 0
    %794 = vmatpush.bf16.msra.mxu0 %v574
    %795 = vmatpush.bf16.msra.mxu0 %v555
    %796 = vmatpush.bf16.msra.mxu0 %v536
    %797 = vmatpush.bf16.msra.mxu0 %v517
    %798 = vmatmul.bf16.gmra.mxu0 %v662
    %v799 = vpop.f32.mrf.mxu0
    %v800 = vadd.f32 %v242, %v799
    %v801 = vpop.f32.mrf.mxu0
    %v802 = vadd.f32 %v242, %v801
    %803 = vdwg.mxu0
    %804 = vmatpush.bf16.msra.mxu0 0
    %805 = vmatpush.bf16.msra.mxu0 0
    %806 = vmatpush.bf16.msra.mxu0 0
    %807 = vmatpush.bf16.msra.mxu0 0
    %808 = vmatpush.bf16.msra.mxu0 %v575
    %809 = vmatpush.bf16.msra.mxu0 %v556
    %810 = vmatpush.bf16.msra.mxu0 %v537
    %811 = vmatpush.bf16.msra.mxu0 %v518
    %812 = vmatmul.bf16.gmra.mxu0 %v662
    %v813 = vpop.f32.mrf.mxu0
    %v814 = vadd.f32 %v243, %v813
    %v815 = vpop.f32.mrf.mxu0
    %v816 = vadd.f32 %v243, %v815
    %817 = vdwg.mxu0
    %818 = vmatpush.bf16.msra.mxu0 0
    %819 = vmatpush.bf16.msra.mxu0 0
    %820 = vmatpush.bf16.msra.mxu0 0
    %821 = vmatpush.bf16.msra.mxu0 0
    %822 = vmatpush.bf16.msra.mxu0 %v576
    %823 = vmatpush.bf16.msra.mxu0 %v557
    %824 = vmatpush.bf16.msra.mxu0 %v538
    %825 = vmatpush.bf16.msra.mxu0 %v519
    %826 = vmatmul.bf16.gmra.mxu0 %v662
    %v827 = vpop.f32.mrf.mxu0
    %v828 = vadd.f32 %v244, %v827
    %v829 = vpop.f32.mrf.mxu0
    %v830 = vadd.f32 %v244, %v829
    %831 = vdwg.mxu0
    %832 = vmatpush.bf16.msra.mxu0 0
    %833 = vmatpush.bf16.msra.mxu0 0
    %834 = vmatpush.bf16.msra.mxu0 0
    %835 = vmatpush.bf16.msra.mxu0 0
    %836 = vmatpush.bf16.msra.mxu0 %v577
    %837 = vmatpush.bf16.msra.mxu0 %v558
    %838 = vmatpush.bf16.msra.mxu0 %v539
    %839 = vmatpush.bf16.msra.mxu0 %v520
    %840 = vmatmul.bf16.gmra.mxu0 %v662
    %v841 = vpop.f32.mrf.mxu0
    %v842 = vadd.f32 %v245, %v841
    %v843 = vpop.f32.mrf.mxu0
    %v844 = vadd.f32 %v245, %v843
    %845 = vdwg.mxu0
    %846 = vmatpush.bf16.msra.mxu0 0
    %847 = vmatpush.bf16.msra.mxu0 0
    %848 = vmatpush.bf16.msra.mxu0 0
    %849 = vmatpush.bf16.msra.mxu0 0
    %850 = vmatpush.bf16.msra.mxu0 %v578
    %851 = vmatpush.bf16.msra.mxu0 %v559
    %852 = vmatpush.bf16.msra.mxu0 %v540
    %853 = vmatpush.bf16.msra.mxu0 %v521
    %854 = vmatmul.bf16.gmra.mxu0 %v662
    %v855 = vpop.f32.mrf.mxu0
    %v856 = vadd.f32 %v246, %v855
    %v857 = vpop.f32.mrf.mxu0
    %v858 = vadd.f32 %v246, %v857
    %859 = vdwg.mxu0
    %860 = vmatpush.bf16.msra.mxu0 0
    %861 = vmatpush.bf16.msra.mxu0 0
    %862 = vmatpush.bf16.msra.mxu0 0
    %863 = vmatpush.bf16.msra.mxu0 0
    %864 = vmatpush.bf16.msra.mxu0 %v579
    %865 = vmatpush.bf16.msra.mxu0 %v560
    %866 = vmatpush.bf16.msra.mxu0 %v541
    %867 = vmatpush.bf16.msra.mxu0 %v522
    %868 = vmatmul.bf16.gmra.mxu0 %v662
    %v869 = vpop.f32.mrf.mxu0
    %v870 = vadd.f32 %v247, %v869
    %v871 = vpop.f32.mrf.mxu0
    %v872 = vadd.f32 %v247, %v871
    %873 = vdwg.mxu0
    %874 = vmatpush.bf16.msra.mxu0 0
    %875 = vmatpush.bf16.msra.mxu0 0
    %876 = vmatpush.bf16.msra.mxu0 0
    %877 = vmatpush.bf16.msra.mxu0 0
    %878 = vmatpush.bf16.msra.mxu0 %v580
    %879 = vmatpush.bf16.msra.mxu0 %v561
    %880 = vmatpush.bf16.msra.mxu0 %v542
    %881 = vmatpush.bf16.msra.mxu0 %v523
    %882 = vmatmul.bf16.gmra.mxu0 %v662
    %v883 = vpop.f32.mrf.mxu0
    %v884 = vadd.f32 %v248, %v883
    %v885 = vpop.f32.mrf.mxu0
    %v886 = vadd.f32 %v248, %v885
    %887 = vdwg.mxu0
    %888 = vmatpush.bf16.msra.mxu0 0
    %889 = vmatpush.bf16.msra.mxu0 0
    %890 = vmatpush.bf16.msra.mxu0 0
    %891 = vmatpush.bf16.msra.mxu0 0
    %892 = vmatpush.bf16.msra.mxu0 %v581
    %893 = vmatpush.bf16.msra.mxu0 %v562
    %894 = vmatpush.bf16.msra.mxu0 %v543
    %895 = vmatpush.bf16.msra.mxu0 %v524
    %896 = vmatmul.bf16.gmra.mxu0 %v662
    %v897 = vpop.f32.mrf.mxu0
    %v898 = vadd.f32 %v249, %v897
    %v899 = vpop.f32.mrf.mxu0
    %v900 = vadd.f32 %v249, %v899
    %901 = vdwg.mxu0
    %902 = vmatpush.bf16.msra.mxu0 0
    %903 = vmatpush.bf16.msra.mxu0 0
    %904 = vmatpush.bf16.msra.mxu0 0
    %905 = vmatpush.bf16.msra.mxu0 0
    %906 = vmatpush.bf16.msra.mxu0 %v582
    %907 = vmatpush.bf16.msra.mxu0 %v563
    %908 = vmatpush.bf16.msra.mxu0 %v544
    %909 = vmatpush.bf16.msra.mxu0 %v525
    %910 = vmatmul.bf16.gmra.mxu0 %v662
    %v911 = vpop.f32.mrf.mxu0
    %v912 = vadd.f32 %v250, %v911
    %v913 = vpop.f32.mrf.mxu0
    %v914 = vadd.f32 %v250, %v913
    %915 = vdwg.mxu0
    %916 = vmatpush.bf16.msra.mxu0 0
    %917 = vmatpush.bf16.msra.mxu0 0
    %918 = vmatpush.bf16.msra.mxu0 0
    %919 = vmatpush.bf16.msra.mxu0 0
    %920 = vmatpush.bf16.msra.mxu0 %v583
    %921 = vmatpush.bf16.msra.mxu0 %v564
    %922 = vmatpush.bf16.msra.mxu0 %v545
    %923 = vmatpush.bf16.msra.mxu0 %v526
    %924 = vmatmul.bf16.gmra.mxu0 %v662
    %v925 = vpop.f32.mrf.mxu0
    %v926 = vadd.f32 %v251, %v925
    %v927 = vpop.f32.mrf.mxu0
    %v928 = vadd.f32 %v251, %v927
    %929 = vdwg.mxu0
    %v930 = vmax.f32 %v674, 0.0
    %v931 = vmax.f32 %v688, 0.0
    %v932 = vmax.f32 %v702, 0.0
    %v933 = vmax.f32 %v716, 0.0
    %v934 = vmax.f32 %v730, 0.0
    %v935 = vmax.f32 %v744, 0.0
    %v936 = vmax.f32 %v758, 0.0
    %v937 = vmax.f32 %v772, 0.0
    %v938 = vmax.f32 %v786, 0.0
    %v939 = vmax.f32 %v800, 0.0
    %v940 = vmax.f32 %v814, 0.0
    %v941 = vmax.f32 %v828, 0.0
    %v942 = vmax.f32 %v842, 0.0
    %v943 = vmax.f32 %v856, 0.0
    %v944 = vmax.f32 %v870, 0.0
    %v945 = vmax.f32 %v884, 0.0
    %v946 = vmax.f32 %v898, 0.0
    %v947 = vmax.f32 %v912, 0.0
    %v948 = vmax.f32 %v926, 0.0
    %v949 = vmax.f32 %v676, 0.0
    %v950 = vmax.f32 %v690, 0.0
    %v951 = vmax.f32 %v704, 0.0
    %v952 = vmax.f32 %v718, 0.0
    %v953 = vmax.f32 %v732, 0.0
    %v954 = vmax.f32 %v746, 0.0
    %v955 = vmax.f32 %v760, 0.0
    %v956 = vmax.f32 %v774, 0.0
    %v957 = vmax.f32 %v788, 0.0
    %v958 = vmax.f32 %v802, 0.0
    %v959 = vmax.f32 %v816, 0.0
    %v960 = vmax.f32 %v830, 0.0
    %v961 = vmax.f32 %v844, 0.0
    %v962 = vmax.f32 %v858, 0.0
    %v963 = vmax.f32 %v872, 0.0
    %v964 = vmax.f32 %v886, 0.0
    %v965 = vmax.f32 %v900, 0.0
    %v966 = vmax.f32 %v914, 0.0
    %v967 = vmax.f32 %v928, 0.0
    %v968 = vpack.c.bf16 %v931, %v930
    %v969 = vpack.c.bf16 %v933, %v932
    %v970 = vpack.c.bf16 %v935, %v934
    %v971 = vpack.c.bf16 %v937, %v936
    %v972 = vpack.c.bf16 %v939, %v938
    %v973 = vpack.c.bf16 %v941, %v940
    %v974 = vpack.c.bf16 %v943, %v942
    %v975 = vpack.c.bf16 %v945, %v944
    %v976 = vpack.c.bf16 %v947, %v946
    %v977 = vpack.c.bf16 %v948, %v948
    %v978 = vpack.c.bf16 %v950, %v949
    %v979 = vpack.c.bf16 %v952, %v951
    %v980 = vpack.c.bf16 %v954, %v953
    %v981 = vpack.c.bf16 %v956, %v955
    %v982 = vpack.c.bf16 %v958, %v957
    %v983 = vpack.c.bf16 %v960, %v959
    %v984 = vpack.c.bf16 %v962, %v961
    %v985 = vpack.c.bf16 %v964, %v963
    %v986 = vpack.c.bf16 %v966, %v965
    %v987 = vpack.c.bf16 %v967, %v967
    %v988 = vld [vmem:[#allocation11] sm:$0xff]
    %v989 = vld [vmem:[#allocation11 + $0x8] sm:$0xff]
    %v990 = vld [vmem:[#allocation11 + $0x10] sm:$0xff]
    %v991 = vld [vmem:[#allocation11 + $0x18] sm:$0xff]
    %v992 = vld [vmem:[#allocation11 + $0x20] sm:$0xff]
    %v993 = vld [vmem:[#allocation11 + $0x28] sm:$0xff]
    %v994 = vld [vmem:[#allocation11 + $0x30] sm:$0xff]
    %v995 = vld [vmem:[#allocation11 + $0x38] sm:$0xff]
    %v996 = vld [vmem:[#allocation11 + $0x40] sm:$0xff]
    %v997 = vld [vmem:[#allocation11 + $0x48] sm:$0xff]
    %v998 = vld [vmem:[#allocation11 + $0x50] sm:$0xff]
    %v999 = vld [vmem:[#allocation11 + $0x58] sm:$0xff]
    %v1000 = vld [vmem:[#allocation11 + $0x60] sm:$0xff]
    %v1001 = vld [vmem:[#allocation11 + $0x68] sm:$0xff]
    %v1002 = vld [vmem:[#allocation11 + $0x70] sm:$0xff]
    %v1003 = vld [vmem:[#allocation11 + $0x78] sm:$0xff]
    %v1004 = vld [vmem:[#allocation11 + $0x80] sm:$0xff]
    %v1005 = vld [vmem:[#allocation11 + $0x88] sm:$0xff]
    %v1006 = vld [vmem:[#allocation11 + $0x90] sm:$0xff]
    %v1007 = vld [vmem:[#allocation11 + $0x98] sm:$0xff]
    %v1008 = vld [vmem:[#allocation11 + $0xa0] sm:$0xff]
    %v1009 = vld [vmem:[#allocation11 + $0xa8] sm:$0xff]
    %v1010 = vld [vmem:[#allocation11 + $0xb0] sm:$0xff]
    %v1011 = vld [vmem:[#allocation11 + $0xb8] sm:$0xff]
    %v1012 = vld [vmem:[#allocation11 + $0xc0] sm:$0xff]
    %v1013 = vld [vmem:[#allocation11 + $0xc8] sm:$0xff]
    %v1014 = vld [vmem:[#allocation11 + $0xd0] sm:$0xff]
    %v1015 = vld [vmem:[#allocation11 + $0xd8] sm:$0xff]
    %v1016 = vld [vmem:[#allocation11 + $0xe0] sm:$0xff]
    %v1017 = vld [vmem:[#allocation11 + $0xe8] sm:$0xff]
    %v1018 = vld [vmem:[#allocation11 + $0xf0] sm:$0xff]
    %v1019 = vld [vmem:[#allocation11 + $0xf8] sm:$0xff]
    %v1020 = vld [vmem:[#allocation11 + $0x100] sm:$0xff]
    %v1021 = vld [vmem:[#allocation11 + $0x108] sm:$0xff]
    %v1022 = vld [vmem:[#allocation11 + $0x110] sm:$0xff]
    %v1023 = vld [vmem:[#allocation11 + $0x118] sm:$0xff]
    %v1024 = vld [vmem:[#allocation11 + $0x120] sm:$0xff]
    %v1025 = vld [vmem:[#allocation11 + $0x128] sm:$0xff]
    %v1026 = vld [vmem:[#allocation11 + $0x130] sm:$0xff]
    %v1027 = vld [vmem:[#allocation11 + $0x138] sm:$0xff]
    %v1028 = vld [vmem:[#allocation11 + $0x140] sm:$0xff]
    %v1029 = vld [vmem:[#allocation11 + $0x148] sm:$0xff]
    %v1030 = vld [vmem:[#allocation11 + $0x150] sm:$0xff]
    %v1031 = vld [vmem:[#allocation11 + $0x158] sm:$0xff]
    %v1032 = vld [vmem:[#allocation11 + $0x160] sm:$0xff]
    %v1033 = vld [vmem:[#allocation11 + $0x168] sm:$0xff]
    %v1034 = vld [vmem:[#allocation11 + $0x170] sm:$0xff]
    %v1035 = vld [vmem:[#allocation11 + $0x178] sm:$0xff]
    %v1036 = vld [vmem:[#allocation11 + $0x180] sm:$0xff]
    %v1037 = vld [vmem:[#allocation11 + $0x188] sm:$0xff]
    %v1038 = vld [vmem:[#allocation11 + $0x190] sm:$0xff]
    %v1039 = vld [vmem:[#allocation11 + $0x198] sm:$0xff]
    %v1040 = vld [vmem:[#allocation11 + $0x1a0] sm:$0xff]
    %v1041 = vld [vmem:[#allocation11 + $0x1a8] sm:$0xff]
    %v1042 = vld [vmem:[#allocation11 + $0x1b0] sm:$0xff]
    %v1043 = vld [vmem:[#allocation11 + $0x1b8] sm:$0xff]
    %v1044 = vld [vmem:[#allocation11 + $0x1c0] sm:$0xff]
    %v1045 = vld [vmem:[#allocation11 + $0x1c8] sm:$0xff]
    %v1046 = vld [vmem:[#allocation11 + $0x1d0] sm:$0xff]
    %v1047 = vld [vmem:[#allocation11 + $0x1d8] sm:$0xff]
    %v1048 = vld [vmem:[#allocation11 + $0x1e0] sm:$0xff]
    %v1049 = vld [vmem:[#allocation11 + $0x1e8] sm:$0xff]
    %v1050 = vld [vmem:[#allocation11 + $0x1f0] sm:$0xff]
    %v1051 = vld [vmem:[#allocation11 + $0x1f8] sm:$0xff]
    %v1052 = vld [vmem:[#allocation11 + $0x200] sm:$0xff]
    %v1053 = vld [vmem:[#allocation11 + $0x208] sm:$0xff]
    %v1054 = vld [vmem:[#allocation11 + $0x210] sm:$0xff]
    %v1055 = vld [vmem:[#allocation11 + $0x218] sm:$0xff]
    %v1056 = vld [vmem:[#allocation11 + $0x220] sm:$0xff]
    %v1057 = vld [vmem:[#allocation11 + $0x228] sm:$0xff]
    %v1058 = vld [vmem:[#allocation11 + $0x230] sm:$0xff]
    %v1059 = vld [vmem:[#allocation11 + $0x238] sm:$0xff]
    %v1060 = vld [vmem:[#allocation11 + $0x240] sm:$0xff]
    %v1061 = vld [vmem:[#allocation11 + $0x248] sm:$0xff]
    %v1062 = vld [vmem:[#allocation11 + $0x250] sm:$0xff]
    %v1063 = vld [vmem:[#allocation11 + $0x258] sm:$0xff]
    %v1064 = vld [vmem:[#allocation11 + $0x260] sm:$0xff]
    %v1065 = vld [vmem:[#allocation11 + $0x268] sm:$0xff]
    %v1066 = vld [vmem:[#allocation11 + $0x270] sm:$0xff]
    %v1067 = vld [vmem:[#allocation11 + $0x278] sm:$0xff]
    %v1068 = vld [vmem:[#allocation11 + $0x280] sm:$0xff]
    %v1069 = vld [vmem:[#allocation11 + $0x288] sm:$0xff]
    %v1070 = vld [vmem:[#allocation11 + $0x290] sm:$0xff]
    %v1071 = vld [vmem:[#allocation11 + $0x298] sm:$0xff]
    %v1072 = vld [vmem:[#allocation11 + $0x2a0] sm:$0xff]
    %v1073 = vld [vmem:[#allocation11 + $0x2a8] sm:$0xff]
    %v1074 = vld [vmem:[#allocation11 + $0x2b0] sm:$0xff]
    %v1075 = vld [vmem:[#allocation11 + $0x2b8] sm:$0xff]
    %v1076 = vld [vmem:[#allocation11 + $0x2c0] sm:$0xff]
    %v1077 = vld [vmem:[#allocation11 + $0x2c8] sm:$0xff]
    %v1078 = vld [vmem:[#allocation11 + $0x2d0] sm:$0xff]
    %v1079 = vld [vmem:[#allocation11 + $0x2d8] sm:$0xff]
    %v1080 = vld [vmem:[#allocation11 + $0x2e0] sm:$0xff]
    %v1081 = vld [vmem:[#allocation11 + $0x2e8] sm:$0xff]
    %v1082 = vld [vmem:[#allocation11 + $0x2f0] sm:$0xff]
    %v1083 = vld [vmem:[#allocation11 + $0x2f8] sm:$0xff]
    %v1084 = vld [vmem:[#allocation11 + $0x300] sm:$0xff]
    %v1085 = vld [vmem:[#allocation11 + $0x308] sm:$0xff]
    %v1086 = vld [vmem:[#allocation11 + $0x310] sm:$0xff]
    %v1087 = vld [vmem:[#allocation11 + $0x318] sm:$0xff]
    %v1088 = vld [vmem:[#allocation11 + $0x320] sm:$0xff]
    %v1089 = vld [vmem:[#allocation11 + $0x328] sm:$0xff]
    %v1090 = vld [vmem:[#allocation11 + $0x330] sm:$0xff]
    %v1091 = vld [vmem:[#allocation11 + $0x338] sm:$0xff]
    %v1092 = vld [vmem:[#allocation11 + $0x340] sm:$0xff]
    %v1093 = vld [vmem:[#allocation11 + $0x348] sm:$0xff]
    %v1094 = vld [vmem:[#allocation11 + $0x350] sm:$0xff]
    %v1095 = vld [vmem:[#allocation11 + $0x358] sm:$0xff]
    %v1096 = vld [vmem:[#allocation11 + $0x360] sm:$0xff]
    %v1097 = vld [vmem:[#allocation11 + $0x368] sm:$0xff]
    %v1098 = vld [vmem:[#allocation11 + $0x370] sm:$0xff]
    %v1099 = vld [vmem:[#allocation11 + $0x378] sm:$0xff]
    %v1100 = vld [vmem:[#allocation11 + $0x380] sm:$0xff]
    %v1101 = vld [vmem:[#allocation11 + $0x388] sm:$0xff]
    %v1102 = vld [vmem:[#allocation11 + $0x390] sm:$0xff]
    %v1103 = vld [vmem:[#allocation11 + $0x398] sm:$0xff]
    %v1104 = vld [vmem:[#allocation11 + $0x3a0] sm:$0xff]
    %v1105 = vld [vmem:[#allocation11 + $0x3a8] sm:$0xff]
    %v1106 = vld [vmem:[#allocation11 + $0x3b0] sm:$0xff]
    %v1107 = vld [vmem:[#allocation11 + $0x3b8] sm:$0xff]
    %v1108 = vld [vmem:[#allocation11 + $0x3c0] sm:$0xff]
    %v1109 = vld [vmem:[#allocation11 + $0x3c8] sm:$0xff]
    %v1110 = vld [vmem:[#allocation11 + $0x3d0] sm:$0xff]
    %v1111 = vld [vmem:[#allocation11 + $0x3d8] sm:$0xff]
    %v1112 = vld [vmem:[#allocation11 + $0x3e0] sm:$0xff]
    %v1113 = vld [vmem:[#allocation11 + $0x3e8] sm:$0xff]
    %v1114 = vld [vmem:[#allocation11 + $0x3f0] sm:$0xff]
    %v1115 = vld [vmem:[#allocation11 + $0x3f8] sm:$0xff]
    %v1116 = vld [vmem:[#allocation11 + $0x400] sm:$0xff]
    %v1117 = vld [vmem:[#allocation11 + $0x408] sm:$0xff]
    %v1118 = vld [vmem:[#allocation11 + $0x410] sm:$0xff]
    %v1119 = vld [vmem:[#allocation11 + $0x418] sm:$0xff]
    %v1120 = vld [vmem:[#allocation11 + $0x420] sm:$0xff]
    %v1121 = vld [vmem:[#allocation11 + $0x428] sm:$0xff]
    %v1122 = vld [vmem:[#allocation11 + $0x430] sm:$0xff]
    %v1123 = vld [vmem:[#allocation11 + $0x438] sm:$0xff]
    %v1124 = vld [vmem:[#allocation11 + $0x440] sm:$0xff]
    %v1125 = vld [vmem:[#allocation11 + $0x448] sm:$0xff]
    %v1126 = vld [vmem:[#allocation11 + $0x450] sm:$0xff]
    %v1127 = vld [vmem:[#allocation11 + $0x458] sm:$0xff]
    %v1128 = vld [vmem:[#allocation11 + $0x460] sm:$0xff]
    %v1129 = vld [vmem:[#allocation11 + $0x468] sm:$0xff]
    %v1130 = vld [vmem:[#allocation11 + $0x470] sm:$0xff]
    %v1131 = vld [vmem:[#allocation11 + $0x478] sm:$0xff]
    %v1132 = vld [vmem:[#allocation11 + $0x480] sm:$0xff]
    %v1133 = vld [vmem:[#allocation11 + $0x488] sm:$0xff]
    %v1134 = vld [vmem:[#allocation11 + $0x490] sm:$0xff]
    %v1135 = vld [vmem:[#allocation11 + $0x498] sm:$0xff]
    %v1136 = vld [vmem:[#allocation11 + $0x4a0] sm:$0xff]
    %v1137 = vld [vmem:[#allocation11 + $0x4a8] sm:$0xff]
    %v1138 = vld [vmem:[#allocation11 + $0x4b0] sm:$0xff]
    %v1139 = vld [vmem:[#allocation11 + $0x4b8] sm:$0xff]
    %v1140 = vld [vmem:[#allocation11 + $0x4c0] sm:$0xff]
    %v1141 = vld [vmem:[#allocation11 + $0x4c8] sm:$0xff]
    %v1142 = vld [vmem:[#allocation11 + $0x4d0] sm:$0xff]
    %v1143 = vld [vmem:[#allocation11 + $0x4d8] sm:$0xff]
    %v1144 = vld [vmem:[#allocation11 + $0x4e0] sm:$0xff]
    %v1145 = vld [vmem:[#allocation11 + $0x4e8] sm:$0xff]
    %v1146 = vld [vmem:[#allocation11 + $0x4f0] sm:$0xff]
    %v1147 = vld [vmem:[#allocation11 + $0x4f8] sm:$0xff]
    %v1148 = vld [vmem:[#allocation11 + $0x500] sm:$0xff]
    %v1149 = vld [vmem:[#allocation11 + $0x508] sm:$0xff]
    %v1150 = vld [vmem:[#allocation11 + $0x510] sm:$0xff]
    %v1151 = vld [vmem:[#allocation11 + $0x518] sm:$0xff]
    %v1152 = vld [vmem:[#allocation11 + $0x520] sm:$0xff]
    %v1153 = vld [vmem:[#allocation11 + $0x528] sm:$0xff]
    %v1154 = vld [vmem:[#allocation11 + $0x530] sm:$0xff]
    %v1155 = vld [vmem:[#allocation11 + $0x538] sm:$0xff]
    %v1156 = vld [vmem:[#allocation11 + $0x540] sm:$0xff]
    %v1157 = vld [vmem:[#allocation11 + $0x548] sm:$0xff]
    %v1158 = vld [vmem:[#allocation11 + $0x550] sm:$0xff]
    %v1159 = vld [vmem:[#allocation11 + $0x558] sm:$0xff]
    %v1160 = vld [vmem:[#allocation11 + $0x560] sm:$0xff]
    %v1161 = vld [vmem:[#allocation11 + $0x568] sm:$0xff]
    %v1162 = vld [vmem:[#allocation11 + $0x570] sm:$0xff]
    %v1163 = vld [vmem:[#allocation11 + $0x578] sm:$0xff]
    %v1164 = vld [vmem:[#allocation11 + $0x580] sm:$0xff]
    %v1165 = vld [vmem:[#allocation11 + $0x588] sm:$0xff]
    %v1166 = vld [vmem:[#allocation11 + $0x590] sm:$0xff]
    %v1167 = vld [vmem:[#allocation11 + $0x598] sm:$0xff]
    %v1168 = vld [vmem:[#allocation11 + $0x5a0] sm:$0xff]
    %v1169 = vld [vmem:[#allocation11 + $0x5a8] sm:$0xff]
    %v1170 = vld [vmem:[#allocation11 + $0x5b0] sm:$0xff]
    %v1171 = vld [vmem:[#allocation11 + $0x5b8] sm:$0xff]
    %v1172 = vld [vmem:[#allocation11 + $0x5c0] sm:$0xff]
    %v1173 = vld [vmem:[#allocation11 + $0x5c8] sm:$0xff]
    %v1174 = vld [vmem:[#allocation11 + $0x5d0] sm:$0xff]
    %v1175 = vld [vmem:[#allocation11 + $0x5d8] sm:$0xff]
    %v1176 = vld [vmem:[#allocation11 + $0x5e0] sm:$0xff]
    %v1177 = vld [vmem:[#allocation11 + $0x5e8] sm:$0xff]
    %v1178 = vld [vmem:[#allocation11 + $0x5f0] sm:$0xff]
    %v1179 = vld [vmem:[#allocation11 + $0x5f8] sm:$0xff]
    %v1180 = vld [vmem:[#allocation11 + $0x600] sm:$0xff]
    %v1181 = vld [vmem:[#allocation11 + $0x608] sm:$0xff]
    %v1182 = vld [vmem:[#allocation11 + $0x610] sm:$0xff]
    %v1183 = vld [vmem:[#allocation11 + $0x618] sm:$0xff]
    %v1184 = vld [vmem:[#allocation11 + $0x620] sm:$0xff]
    %v1185 = vld [vmem:[#allocation11 + $0x628] sm:$0xff]
    %v1186 = vld [vmem:[#allocation11 + $0x630] sm:$0xff]
    %v1187 = vld [vmem:[#allocation11 + $0x638] sm:$0xff]
    %v1188 = vld [vmem:[#allocation11 + $0x640] sm:$0xff]
    %v1189 = vld [vmem:[#allocation11 + $0x648] sm:$0xff]
    %v1190 = vld [vmem:[#allocation11 + $0x650] sm:$0xff]
    %v1191 = vld [vmem:[#allocation11 + $0x658] sm:$0xff]
    %v1192 = vld [vmem:[#allocation11 + $0x660] sm:$0xff]
    %v1193 = vld [vmem:[#allocation11 + $0x668] sm:$0xff]
    %v1194 = vld [vmem:[#allocation11 + $0x670] sm:$0xff]
    %v1195 = vld [vmem:[#allocation11 + $0x678] sm:$0xff]
    %v1196 = vld [vmem:[%s5] sm:$0x3]
    %v1198 = vperm.slane %v1196, 0
    %v1199 = vperm.slane %v1196, 1
    %v1216 = vunpack.c.l.b16 %v968
    %v1217 = vunpack.c.h.b16 %v968
    %v1218 = vunpack.c.l.b16 %v969
    %v1219 = vunpack.c.h.b16 %v969
    %v1220 = vunpack.c.l.b16 %v970
    %v1221 = vunpack.c.h.b16 %v970
    %v1222 = vunpack.c.l.b16 %v971
    %v1223 = vunpack.c.h.b16 %v971
    %v1224 = vunpack.c.l.b16 %v972
    %v1225 = vunpack.c.h.b16 %v972
    %v1226 = vunpack.c.l.b16 %v973
    %v1227 = vunpack.c.h.b16 %v973
    %v1228 = vunpack.c.l.b16 %v974
    %v1229 = vunpack.c.l.b16 %v978
    %v1230 = vunpack.c.h.b16 %v978
    %v1231 = vunpack.c.l.b16 %v979
    %v1232 = vunpack.c.h.b16 %v979
    %v1233 = vunpack.c.l.b16 %v980
    %v1234 = vunpack.c.h.b16 %v980
    %v1235 = vunpack.c.l.b16 %v981
    %v1236 = vunpack.c.h.b16 %v981
    %v1237 = vunpack.c.l.b16 %v982
    %v1238 = vunpack.c.h.b16 %v982
    %v1239 = vunpack.c.l.b16 %v983
    %v1240 = vunpack.c.h.b16 %v983
    %v1241 = vunpack.c.l.b16 %v984
    %v1242 = vpack.c.b16 %v1229, %v1216
    %v1243 = vpack.c.b16 %v1230, %v1217
    %v1244 = vpack.c.b16 %v1231, %v1218
    %v1245 = vpack.c.b16 %v1232, %v1219
    %v1246 = vpack.c.b16 %v1233, %v1220
    %v1247 = vpack.c.b16 %v1234, %v1221
    %v1248 = vpack.c.b16 %v1235, %v1222
    %v1249 = vpack.c.b16 %v1236, %v1223
    %v1250 = vpack.c.b16 %v1237, %v1224
    %v1251 = vpack.c.b16 %v1238, %v1225
    %v1252 = vpack.c.b16 %v1239, %v1226
    %v1253 = vpack.c.b16 %v1240, %v1227
    %v1254 = vpack.c.b16 %v1241, %v1228
    %v1476 = vunpack.c.l.b16 %v988
    %v1477 = vunpack.c.h.b16 %v988
    %v1478 = vunpack.c.l.b16 %v989
    %v1479 = vunpack.c.h.b16 %v989
    %v1480 = vunpack.c.l.b16 %v990
    %v1481 = vunpack.c.h.b16 %v990
    %v1482 = vunpack.c.l.b16 %v991
    %v1483 = vunpack.c.h.b16 %v991
    %v1484 = vunpack.c.l.b16 %v992
    %v1485 = vunpack.c.h.b16 %v992
    %v1486 = vunpack.c.l.b16 %v993
    %v1487 = vunpack.c.h.b16 %v993
    %v1488 = vunpack.c.l.b16 %v994
    %v1489 = vunpack.c.h.b16 %v994
    %v1490 = vunpack.c.l.b16 %v995
    %v1491 = vunpack.c.h.b16 %v995
    %v1492 = vunpack.c.l.b16 %v996
    %v1493 = vunpack.c.h.b16 %v996
    %v1494 = vunpack.c.l.b16 %v997
    %v1495 = vunpack.c.h.b16 %v997
    %v1496 = vunpack.c.l.b16 %v998
    %v1497 = vunpack.c.h.b16 %v998
    %v1498 = vunpack.c.l.b16 %v999
    %v1499 = vunpack.c.h.b16 %v999
    %v1500 = vunpack.c.l.b16 %v1000
    %v1501 = vunpack.c.h.b16 %v1000
    %v1502 = vunpack.c.l.b16 %v1001
    %v1503 = vunpack.c.h.b16 %v1001
    %v1504 = vunpack.c.l.b16 %v1002
    %v1505 = vunpack.c.h.b16 %v1002
    %v1506 = vunpack.c.l.b16 %v1003
    %v1507 = vunpack.c.h.b16 %v1003
    %v1508 = vunpack.c.l.b16 %v1004
    %v1509 = vunpack.c.h.b16 %v1004
    %v1510 = vunpack.c.l.b16 %v1005
    %v1511 = vunpack.c.h.b16 %v1005
    %v1512 = vunpack.c.l.b16 %v1006
    %v1513 = vunpack.c.h.b16 %v1006
    %v1514 = vunpack.c.l.b16 %v1007
    %v1515 = vunpack.c.h.b16 %v1007
    %v1516 = vunpack.c.l.b16 %v1008
    %v1517 = vunpack.c.h.b16 %v1008
    %v1518 = vunpack.c.l.b16 %v1009
    %v1519 = vunpack.c.h.b16 %v1009
    %v1520 = vunpack.c.l.b16 %v1010
    %v1521 = vunpack.c.h.b16 %v1010
    %v1522 = vunpack.c.l.b16 %v1011
    %v1523 = vunpack.c.h.b16 %v1011
    %v1524 = vunpack.c.l.b16 %v1012
    %v1525 = vunpack.c.h.b16 %v1012
    %v1526 = vunpack.c.l.b16 %v1013
    %v1527 = vunpack.c.h.b16 %v1013
    %v1528 = vunpack.c.l.b16 %v1014
    %v1529 = vunpack.c.h.b16 %v1014
    %v1530 = vunpack.c.l.b16 %v1015
    %v1531 = vunpack.c.h.b16 %v1015
    %v1532 = vunpack.c.l.b16 %v1016
    %v1533 = vunpack.c.h.b16 %v1016
    %v1534 = vunpack.c.l.b16 %v1017
    %v1535 = vunpack.c.h.b16 %v1017
    %v1536 = vunpack.c.l.b16 %v1018
    %v1537 = vunpack.c.h.b16 %v1018
    %v1538 = vunpack.c.l.b16 %v1019
    %v1539 = vunpack.c.h.b16 %v1019
    %v1540 = vunpack.c.l.b16 %v1020
    %v1541 = vunpack.c.h.b16 %v1020
    %v1542 = vunpack.c.l.b16 %v1021
    %v1543 = vunpack.c.h.b16 %v1021
    %v1544 = vunpack.c.l.b16 %v1022
    %v1545 = vunpack.c.h.b16 %v1022
    %v1546 = vunpack.c.l.b16 %v1023
    %v1547 = vunpack.c.h.b16 %v1023
    %v1548 = vunpack.c.l.b16 %v1024
    %v1549 = vunpack.c.h.b16 %v1024
    %v1550 = vunpack.c.l.b16 %v1025
    %v1551 = vunpack.c.h.b16 %v1025
    %v1552 = vunpack.c.l.b16 %v1026
    %v1553 = vunpack.c.h.b16 %v1026
    %v1554 = vunpack.c.l.b16 %v1027
    %v1555 = vunpack.c.h.b16 %v1027
    %v1556 = vunpack.c.l.b16 %v1028
    %v1557 = vunpack.c.h.b16 %v1028
    %v1558 = vunpack.c.l.b16 %v1029
    %v1559 = vunpack.c.h.b16 %v1029
    %v1560 = vunpack.c.l.b16 %v1030
    %v1561 = vunpack.c.h.b16 %v1030
    %v1562 = vunpack.c.l.b16 %v1031
    %v1563 = vunpack.c.h.b16 %v1031
    %v1564 = vunpack.c.l.b16 %v1032
    %v1565 = vunpack.c.h.b16 %v1032
    %v1566 = vunpack.c.l.b16 %v1033
    %v1567 = vunpack.c.h.b16 %v1033
    %v1568 = vunpack.c.l.b16 %v1034
    %v1569 = vunpack.c.h.b16 %v1034
    %v1570 = vunpack.c.l.b16 %v1035
    %v1571 = vunpack.c.h.b16 %v1035
    %v1572 = vunpack.c.l.b16 %v1036
    %v1573 = vunpack.c.h.b16 %v1036
    %v1574 = vunpack.c.l.b16 %v1037
    %v1575 = vunpack.c.h.b16 %v1037
    %v1576 = vunpack.c.l.b16 %v1038
    %v1577 = vunpack.c.h.b16 %v1038
    %v1578 = vunpack.c.l.b16 %v1039
    %v1579 = vunpack.c.h.b16 %v1039
    %v1580 = vunpack.c.l.b16 %v1040
    %v1581 = vunpack.c.h.b16 %v1040
    %v1582 = vunpack.c.l.b16 %v1041
    %v1583 = vunpack.c.h.b16 %v1041
    %v1584 = vunpack.c.l.b16 %v1042
    %v1585 = vunpack.c.h.b16 %v1042
    %v1586 = vunpack.c.l.b16 %v1043
    %v1587 = vunpack.c.h.b16 %v1043
    %v1588 = vunpack.c.l.b16 %v1044
    %v1589 = vunpack.c.h.b16 %v1044
    %v1590 = vunpack.c.l.b16 %v1045
    %v1591 = vunpack.c.h.b16 %v1045
    %v1592 = vunpack.c.l.b16 %v1046
    %v1593 = vunpack.c.h.b16 %v1046
    %v1594 = vunpack.c.l.b16 %v1047
    %v1595 = vunpack.c.h.b16 %v1047
    %v1596 = vunpack.c.l.b16 %v1048
    %v1597 = vunpack.c.h.b16 %v1048
    %v1598 = vunpack.c.l.b16 %v1049
    %v1599 = vunpack.c.h.b16 %v1049
    %v1600 = vunpack.c.l.b16 %v1050
    %v1601 = vunpack.c.h.b16 %v1050
    %v1602 = vunpack.c.l.b16 %v1051
    %v1603 = vunpack.c.h.b16 %v1051
    %v1604 = vunpack.c.l.b16 %v1052
    %v1605 = vunpack.c.h.b16 %v1052
    %v1606 = vunpack.c.l.b16 %v1053
    %v1607 = vunpack.c.h.b16 %v1053
    %v1608 = vunpack.c.l.b16 %v1054
    %v1609 = vunpack.c.h.b16 %v1054
    %v1610 = vunpack.c.l.b16 %v1055
    %v1611 = vunpack.c.h.b16 %v1055
    %v1612 = vunpack.c.l.b16 %v1056
    %v1613 = vunpack.c.h.b16 %v1056
    %v1614 = vunpack.c.l.b16 %v1057
    %v1615 = vunpack.c.h.b16 %v1057
    %v1616 = vunpack.c.l.b16 %v1058
    %v1617 = vunpack.c.h.b16 %v1058
    %v1618 = vunpack.c.l.b16 %v1059
    %v1619 = vunpack.c.h.b16 %v1059
    %v1620 = vunpack.c.l.b16 %v1060
    %v1621 = vunpack.c.h.b16 %v1060
    %v1622 = vunpack.c.l.b16 %v1061
    %v1623 = vunpack.c.h.b16 %v1061
    %v1624 = vunpack.c.l.b16 %v1062
    %v1625 = vunpack.c.h.b16 %v1062
    %v1626 = vunpack.c.l.b16 %v1063
    %v1627 = vunpack.c.h.b16 %v1063
    %v1628 = vunpack.c.l.b16 %v1064
    %v1629 = vunpack.c.h.b16 %v1064
    %v1630 = vunpack.c.l.b16 %v1065
    %v1631 = vunpack.c.h.b16 %v1065
    %v1632 = vunpack.c.l.b16 %v1066
    %v1633 = vunpack.c.h.b16 %v1066
    %v1634 = vunpack.c.l.b16 %v1067
    %v1635 = vunpack.c.h.b16 %v1067
    %v1636 = vunpack.c.l.b16 %v1068
    %v1637 = vunpack.c.h.b16 %v1068
    %v1638 = vunpack.c.l.b16 %v1069
    %v1639 = vunpack.c.h.b16 %v1069
    %v1640 = vunpack.c.l.b16 %v1070
    %v1641 = vunpack.c.h.b16 %v1070
    %v1642 = vunpack.c.l.b16 %v1071
    %v1643 = vunpack.c.h.b16 %v1071
    %v1644 = vunpack.c.l.b16 %v1072
    %v1645 = vunpack.c.h.b16 %v1072
    %v1646 = vunpack.c.l.b16 %v1073
    %v1647 = vunpack.c.h.b16 %v1073
    %v1648 = vunpack.c.l.b16 %v1074
    %v1649 = vunpack.c.h.b16 %v1074
    %v1650 = vunpack.c.l.b16 %v1075
    %v1651 = vunpack.c.h.b16 %v1075
    %v1652 = vunpack.c.l.b16 %v1076
    %v1653 = vunpack.c.h.b16 %v1076
    %v1654 = vunpack.c.l.b16 %v1077
    %v1655 = vunpack.c.h.b16 %v1077
    %v1656 = vunpack.c.l.b16 %v1078
    %v1657 = vunpack.c.h.b16 %v1078
    %v1658 = vunpack.c.l.b16 %v1079
    %v1659 = vunpack.c.h.b16 %v1079
    %v1660 = vunpack.c.l.b16 %v1080
    %v1661 = vunpack.c.h.b16 %v1080
    %v1662 = vunpack.c.l.b16 %v1081
    %v1663 = vunpack.c.h.b16 %v1081
    %v1664 = vunpack.c.l.b16 %v1082
    %v1665 = vunpack.c.h.b16 %v1082
    %v1666 = vunpack.c.l.b16 %v1083
    %v1667 = vunpack.c.h.b16 %v1083
    %v1668 = vunpack.c.l.b16 %v1084
    %v1669 = vunpack.c.h.b16 %v1084
    %v1670 = vunpack.c.l.b16 %v1085
    %v1671 = vunpack.c.h.b16 %v1085
    %v1672 = vunpack.c.l.b16 %v1086
    %v1673 = vunpack.c.h.b16 %v1086
    %v1674 = vunpack.c.l.b16 %v1087
    %v1675 = vunpack.c.h.b16 %v1087
    %v1676 = vunpack.c.l.b16 %v1088
    %v1677 = vunpack.c.h.b16 %v1088
    %v1678 = vunpack.c.l.b16 %v1089
    %v1679 = vunpack.c.h.b16 %v1089
    %v1680 = vunpack.c.l.b16 %v1090
    %v1681 = vunpack.c.h.b16 %v1090
    %v1682 = vunpack.c.l.b16 %v1091
    %v1683 = vunpack.c.h.b16 %v1091
    %v1684 = vunpack.c.l.b16 %v1092
    %v1685 = vunpack.c.h.b16 %v1092
    %v1686 = vunpack.c.l.b16 %v1093
    %v1687 = vunpack.c.h.b16 %v1093
    %v1688 = vunpack.c.l.b16 %v1094
    %v1689 = vunpack.c.h.b16 %v1094
    %v1690 = vunpack.c.l.b16 %v1095
    %v1691 = vunpack.c.h.b16 %v1095
    %v1692 = vunpack.c.l.b16 %v1096
    %v1693 = vunpack.c.h.b16 %v1096
    %v1694 = vunpack.c.l.b16 %v1097
    %v1695 = vunpack.c.h.b16 %v1097
    %v1696 = vunpack.c.l.b16 %v1098
    %v1697 = vunpack.c.h.b16 %v1098
    %v1698 = vunpack.c.l.b16 %v1099
    %v1699 = vunpack.c.h.b16 %v1099
    %v1700 = vunpack.c.l.b16 %v1100
    %v1701 = vunpack.c.h.b16 %v1100
    %v1702 = vunpack.c.l.b16 %v1101
    %v1703 = vunpack.c.h.b16 %v1101
    %v1704 = vunpack.c.l.b16 %v1102
    %v1705 = vunpack.c.h.b16 %v1102
    %v1706 = vunpack.c.l.b16 %v1103
    %v1707 = vunpack.c.h.b16 %v1103
    %v1708 = vunpack.c.l.b16 %v1104
    %v1709 = vunpack.c.h.b16 %v1104
    %v1710 = vunpack.c.l.b16 %v1105
    %v1711 = vunpack.c.h.b16 %v1105
    %v1712 = vunpack.c.l.b16 %v1106
    %v1713 = vunpack.c.h.b16 %v1106
    %v1714 = vunpack.c.l.b16 %v1107
    %v1715 = vunpack.c.h.b16 %v1107
    %v1716 = vunpack.c.l.b16 %v1108
    %v1717 = vunpack.c.h.b16 %v1108
    %v1718 = vunpack.c.l.b16 %v1109
    %v1719 = vunpack.c.h.b16 %v1109
    %v1720 = vunpack.c.l.b16 %v1110
    %v1721 = vunpack.c.h.b16 %v1110
    %v1722 = vunpack.c.l.b16 %v1111
    %v1723 = vunpack.c.h.b16 %v1111
    %v1724 = vunpack.c.l.b16 %v1112
    %v1725 = vunpack.c.h.b16 %v1112
    %v1726 = vunpack.c.l.b16 %v1113
    %v1727 = vunpack.c.h.b16 %v1113
    %v1728 = vunpack.c.l.b16 %v1114
    %v1729 = vunpack.c.h.b16 %v1114
    %v1730 = vunpack.c.l.b16 %v1115
    %v1731 = vunpack.c.h.b16 %v1115
    %v1732 = vunpack.c.l.b16 %v1116
    %v1733 = vunpack.c.h.b16 %v1116
    %v1734 = vunpack.c.l.b16 %v1117
    %v1735 = vunpack.c.h.b16 %v1117
    %v1736 = vunpack.c.l.b16 %v1118
    %v1737 = vunpack.c.h.b16 %v1118
    %v1738 = vunpack.c.l.b16 %v1119
    %v1739 = vunpack.c.h.b16 %v1119
    %v1740 = vunpack.c.l.b16 %v1120
    %v1741 = vunpack.c.h.b16 %v1120
    %v1742 = vunpack.c.l.b16 %v1121
    %v1743 = vunpack.c.h.b16 %v1121
    %v1744 = vunpack.c.l.b16 %v1122
    %v1745 = vunpack.c.h.b16 %v1122
    %v1746 = vunpack.c.l.b16 %v1123
    %v1747 = vunpack.c.h.b16 %v1123
    %v1748 = vunpack.c.l.b16 %v1124
    %v1749 = vunpack.c.h.b16 %v1124
    %v1750 = vunpack.c.l.b16 %v1125
    %v1751 = vunpack.c.h.b16 %v1125
    %v1752 = vunpack.c.l.b16 %v1126
    %v1753 = vunpack.c.h.b16 %v1126
    %v1754 = vunpack.c.l.b16 %v1127
    %v1755 = vunpack.c.h.b16 %v1127
    %v1756 = vunpack.c.l.b16 %v1128
    %v1757 = vunpack.c.h.b16 %v1128
    %v1758 = vunpack.c.l.b16 %v1129
    %v1759 = vunpack.c.h.b16 %v1129
    %v1760 = vunpack.c.l.b16 %v1130
    %v1761 = vunpack.c.h.b16 %v1130
    %v1762 = vunpack.c.l.b16 %v1131
    %v1763 = vunpack.c.h.b16 %v1131
    %v1764 = vunpack.c.l.b16 %v1132
    %v1765 = vunpack.c.h.b16 %v1132
    %v1766 = vunpack.c.l.b16 %v1133
    %v1767 = vunpack.c.h.b16 %v1133
    %v1768 = vunpack.c.l.b16 %v1134
    %v1769 = vunpack.c.h.b16 %v1134
    %v1770 = vunpack.c.l.b16 %v1135
    %v1771 = vunpack.c.h.b16 %v1135
    %v1772 = vunpack.c.l.b16 %v1136
    %v1773 = vunpack.c.h.b16 %v1136
    %v1774 = vunpack.c.l.b16 %v1137
    %v1775 = vunpack.c.h.b16 %v1137
    %v1776 = vunpack.c.l.b16 %v1138
    %v1777 = vunpack.c.h.b16 %v1138
    %v1778 = vunpack.c.l.b16 %v1139
    %v1779 = vunpack.c.h.b16 %v1139
    %v1780 = vunpack.c.l.b16 %v1140
    %v1781 = vunpack.c.h.b16 %v1140
    %v1782 = vunpack.c.l.b16 %v1141
    %v1783 = vunpack.c.h.b16 %v1141
    %v1784 = vunpack.c.l.b16 %v1142
    %v1785 = vunpack.c.h.b16 %v1142
    %v1786 = vunpack.c.l.b16 %v1143
    %v1787 = vunpack.c.h.b16 %v1143
    %v1788 = vunpack.c.l.b16 %v1144
    %v1789 = vunpack.c.h.b16 %v1144
    %v1790 = vunpack.c.l.b16 %v1145
    %v1791 = vunpack.c.h.b16 %v1145
    %v1792 = vunpack.c.l.b16 %v1146
    %v1793 = vunpack.c.h.b16 %v1146
    %v1794 = vunpack.c.l.b16 %v1147
    %v1795 = vunpack.c.h.b16 %v1147
    %v1796 = vunpack.c.l.b16 %v1148
    %v1797 = vunpack.c.h.b16 %v1148
    %v1798 = vunpack.c.l.b16 %v1149
    %v1799 = vunpack.c.h.b16 %v1149
    %v1800 = vunpack.c.l.b16 %v1150
    %v1801 = vunpack.c.h.b16 %v1150
    %v1802 = vunpack.c.l.b16 %v1151
    %v1803 = vunpack.c.h.b16 %v1151
    %v1804 = vunpack.c.l.b16 %v1152
    %v1805 = vunpack.c.h.b16 %v1152
    %v1806 = vunpack.c.l.b16 %v1153
    %v1807 = vunpack.c.h.b16 %v1153
    %v1808 = vunpack.c.l.b16 %v1154
    %v1809 = vunpack.c.h.b16 %v1154
    %v1810 = vunpack.c.l.b16 %v1155
    %v1811 = vunpack.c.h.b16 %v1155
    %v1812 = vunpack.c.l.b16 %v1156
    %v1813 = vunpack.c.h.b16 %v1156
    %v1814 = vunpack.c.l.b16 %v1157
    %v1815 = vunpack.c.h.b16 %v1157
    %v1816 = vunpack.c.l.b16 %v1158
    %v1817 = vunpack.c.h.b16 %v1158
    %v1818 = vunpack.c.l.b16 %v1159
    %v1819 = vunpack.c.h.b16 %v1159
    %v1820 = vunpack.c.l.b16 %v1160
    %v1821 = vunpack.c.h.b16 %v1160
    %v1822 = vunpack.c.l.b16 %v1161
    %v1823 = vunpack.c.h.b16 %v1161
    %v1824 = vunpack.c.l.b16 %v1162
    %v1825 = vunpack.c.h.b16 %v1162
    %v1826 = vunpack.c.l.b16 %v1163
    %v1827 = vunpack.c.h.b16 %v1163
    %v1828 = vunpack.c.l.b16 %v1164
    %v1829 = vunpack.c.h.b16 %v1164
    %v1830 = vunpack.c.l.b16 %v1165
    %v1831 = vunpack.c.h.b16 %v1165
    %v1832 = vunpack.c.l.b16 %v1166
    %v1833 = vunpack.c.h.b16 %v1166
    %v1834 = vunpack.c.l.b16 %v1167
    %v1835 = vunpack.c.h.b16 %v1167
    %v1836 = vunpack.c.l.b16 %v1168
    %v1837 = vunpack.c.h.b16 %v1168
    %v1838 = vunpack.c.l.b16 %v1169
    %v1839 = vunpack.c.h.b16 %v1169
    %v1840 = vunpack.c.l.b16 %v1170
    %v1841 = vunpack.c.h.b16 %v1170
    %v1842 = vunpack.c.l.b16 %v1171
    %v1843 = vunpack.c.h.b16 %v1171
    %v1844 = vunpack.c.l.b16 %v1172
    %v1845 = vunpack.c.h.b16 %v1172
    %v1846 = vunpack.c.l.b16 %v1173
    %v1847 = vunpack.c.h.b16 %v1173
    %v1848 = vunpack.c.l.b16 %v1174
    %v1849 = vunpack.c.h.b16 %v1174
    %v1850 = vunpack.c.l.b16 %v1175
    %v1851 = vunpack.c.h.b16 %v1175
    %v1852 = vunpack.c.l.b16 %v1176
    %v1853 = vunpack.c.h.b16 %v1176
    %v1854 = vunpack.c.l.b16 %v1177
    %v1855 = vunpack.c.h.b16 %v1177
    %v1856 = vunpack.c.l.b16 %v1178
    %v1857 = vunpack.c.h.b16 %v1178
    %v1858 = vunpack.c.l.b16 %v1179
    %v1859 = vunpack.c.h.b16 %v1179
    %v1860 = vunpack.c.l.b16 %v1180
    %v1861 = vunpack.c.h.b16 %v1180
    %v1862 = vunpack.c.l.b16 %v1181
    %v1863 = vunpack.c.h.b16 %v1181
    %v1864 = vunpack.c.l.b16 %v1182
    %v1865 = vunpack.c.h.b16 %v1182
    %v1866 = vunpack.c.l.b16 %v1183
    %v1867 = vunpack.c.h.b16 %v1183
    %v1868 = vunpack.c.l.b16 %v1184
    %v1869 = vunpack.c.h.b16 %v1184
    %v1870 = vunpack.c.l.b16 %v1185
    %v1871 = vunpack.c.h.b16 %v1185
    %v1872 = vunpack.c.l.b16 %v1186
    %v1873 = vunpack.c.h.b16 %v1186
    %v1874 = vunpack.c.l.b16 %v1187
    %v1875 = vunpack.c.h.b16 %v1187
    %v1876 = vunpack.c.l.b16 %v1188
    %v1877 = vunpack.c.h.b16 %v1188
    %v1878 = vunpack.c.l.b16 %v1189
    %v1879 = vunpack.c.h.b16 %v1189
    %v1880 = vunpack.c.l.b16 %v1190
    %v1881 = vunpack.c.h.b16 %v1190
    %v1882 = vunpack.c.l.b16 %v1191
    %v1883 = vunpack.c.h.b16 %v1191
    %v1884 = vunpack.c.l.b16 %v1192
    %v1885 = vunpack.c.h.b16 %v1192
    %v1886 = vunpack.c.l.b16 %v1193
    %v1887 = vunpack.c.h.b16 %v1193
    %v1888 = vunpack.c.l.b16 %v1194
    %v1889 = vunpack.c.h.b16 %v1194
    %v1890 = vunpack.c.l.b16 %v1195
    %v1891 = vunpack.c.h.b16 %v1195
    %v1892 = vpack.c.b16 %v1478, %v1476
    %v1893 = vpack.c.b16 %v1479, %v1477
    %v1894 = vpack.c.b16 %v1482, %v1480
    %v1895 = vpack.c.b16 %v1483, %v1481
    %v1896 = vpack.c.b16 %v1486, %v1484
    %v1897 = vpack.c.b16 %v1487, %v1485
    %v1898 = vpack.c.b16 %v1490, %v1488
    %v1899 = vpack.c.b16 %v1491, %v1489
    %v1900 = vpack.c.b16 %v1494, %v1492
    %v1901 = vpack.c.b16 %v1495, %v1493
    %v1902 = vpack.c.b16 %v1498, %v1496
    %v1903 = vpack.c.b16 %v1499, %v1497
    %v1904 = vpack.c.b16 %v1502, %v1500
    %v1905 = vpack.c.b16 %v1503, %v1501
    %v1906 = vpack.c.b16 %v1506, %v1504
    %v1907 = vpack.c.b16 %v1507, %v1505
    %v1908 = vpack.c.b16 %v1510, %v1508
    %v1909 = vpack.c.b16 %v1511, %v1509
    %v1910 = vpack.c.b16 %v1514, %v1512
    %v1911 = vpack.c.b16 %v1515, %v1513
    %v1912 = vpack.c.b16 %v1518, %v1516
    %v1913 = vpack.c.b16 %v1519, %v1517
    %v1914 = vpack.c.b16 %v1522, %v1520
    %v1915 = vpack.c.b16 %v1523, %v1521
    %v1916 = vpack.c.b16 %v1526, %v1524
    %v1917 = vpack.c.b16 %v1527, %v1525
    %v1918 = vpack.c.b16 %v1530, %v1528
    %v1919 = vpack.c.b16 %v1531, %v1529
    %v1920 = vpack.c.b16 %v1534, %v1532
    %v1921 = vpack.c.b16 %v1535, %v1533
    %v1922 = vpack.c.b16 %v1538, %v1536
    %v1923 = vpack.c.b16 %v1539, %v1537
    %v1924 = vpack.c.b16 %v1542, %v1540
    %v1925 = vpack.c.b16 %v1543, %v1541
    %v1926 = vpack.c.b16 %v1546, %v1544
    %v1927 = vpack.c.b16 %v1547, %v1545
    %v1928 = vpack.c.b16 %v1550, %v1548
    %v1929 = vpack.c.b16 %v1551, %v1549
    %v1930 = vpack.c.b16 %v1554, %v1552
    %v1931 = vpack.c.b16 %v1555, %v1553
    %v1932 = vpack.c.b16 %v1558, %v1556
    %v1933 = vpack.c.b16 %v1559, %v1557
    %v1934 = vpack.c.b16 %v1562, %v1560
    %v1935 = vpack.c.b16 %v1563, %v1561
    %v1936 = vpack.c.b16 %v1566, %v1564
    %v1937 = vpack.c.b16 %v1567, %v1565
    %v1938 = vpack.c.b16 %v1570, %v1568
    %v1939 = vpack.c.b16 %v1571, %v1569
    %v1940 = vpack.c.b16 %v1574, %v1572
    %v1941 = vpack.c.b16 %v1575, %v1573
    %v1942 = vpack.c.b16 %v1578, %v1576
    %v1943 = vpack.c.b16 %v1579, %v1577
    %v1944 = vpack.c.b16 %v1582, %v1580
    %v1945 = vpack.c.b16 %v1583, %v1581
    %v1946 = vpack.c.b16 %v1586, %v1584
    %v1947 = vpack.c.b16 %v1587, %v1585
    %v1948 = vpack.c.b16 %v1590, %v1588
    %v1949 = vpack.c.b16 %v1591, %v1589
    %v1950 = vpack.c.b16 %v1594, %v1592
    %v1951 = vpack.c.b16 %v1595, %v1593
    %v1952 = vpack.c.b16 %v1598, %v1596
    %v1953 = vpack.c.b16 %v1599, %v1597
    %v1954 = vpack.c.b16 %v1602, %v1600
    %v1955 = vpack.c.b16 %v1603, %v1601
    %v1956 = vpack.c.b16 %v1606, %v1604
    %v1957 = vpack.c.b16 %v1607, %v1605
    %v1958 = vpack.c.b16 %v1610, %v1608
    %v1959 = vpack.c.b16 %v1611, %v1609
    %v1960 = vpack.c.b16 %v1614, %v1612
    %v1961 = vpack.c.b16 %v1615, %v1613
    %v1962 = vpack.c.b16 %v1618, %v1616
    %v1963 = vpack.c.b16 %v1619, %v1617
    %v1964 = vpack.c.b16 %v1622, %v1620
    %v1965 = vpack.c.b16 %v1623, %v1621
    %v1966 = vpack.c.b16 %v1626, %v1624
    %v1967 = vpack.c.b16 %v1627, %v1625
    %v1968 = vpack.c.b16 %v1630, %v1628
    %v1969 = vpack.c.b16 %v1631, %v1629
    %v1970 = vpack.c.b16 %v1634, %v1632
    %v1971 = vpack.c.b16 %v1635, %v1633
    %v1972 = vpack.c.b16 %v1638, %v1636
    %v1973 = vpack.c.b16 %v1639, %v1637
    %v1974 = vpack.c.b16 %v1642, %v1640
    %v1975 = vpack.c.b16 %v1643, %v1641
    %v1976 = vpack.c.b16 %v1646, %v1644
    %v1977 = vpack.c.b16 %v1647, %v1645
    %v1978 = vpack.c.b16 %v1650, %v1648
    %v1979 = vpack.c.b16 %v1651, %v1649
    %v1980 = vpack.c.b16 %v1654, %v1652
    %v1981 = vpack.c.b16 %v1655, %v1653
    %v1982 = vpack.c.b16 %v1658, %v1656
    %v1983 = vpack.c.b16 %v1659, %v1657
    %v1984 = vpack.c.b16 %v1662, %v1660
    %v1985 = vpack.c.b16 %v1663, %v1661
    %v1986 = vpack.c.b16 %v1666, %v1664
    %v1987 = vpack.c.b16 %v1667, %v1665
    %v1988 = vpack.c.b16 %v1670, %v1668
    %v1989 = vpack.c.b16 %v1671, %v1669
    %v1990 = vpack.c.b16 %v1674, %v1672
    %v1991 = vpack.c.b16 %v1675, %v1673
    %v1992 = vpack.c.b16 %v1678, %v1676
    %v1993 = vpack.c.b16 %v1679, %v1677
    %v1994 = vpack.c.b16 %v1682, %v1680
    %v1995 = vpack.c.b16 %v1683, %v1681
    %v1996 = vpack.c.b16 %v1686, %v1684
    %v1997 = vpack.c.b16 %v1687, %v1685
    %v1998 = vpack.c.b16 %v1690, %v1688
    %v1999 = vpack.c.b16 %v1691, %v1689
    %v2000 = vpack.c.b16 %v1694, %v1692
    %v2001 = vpack.c.b16 %v1695, %v1693
    %v2002 = vpack.c.b16 %v1698, %v1696
    %v2003 = vpack.c.b16 %v1699, %v1697
    %v2004 = vpack.c.b16 %v1702, %v1700
    %v2005 = vpack.c.b16 %v1703, %v1701
    %v2006 = vpack.c.b16 %v1706, %v1704
    %v2007 = vpack.c.b16 %v1707, %v1705
    %v2008 = vpack.c.b16 %v1710, %v1708
    %v2009 = vpack.c.b16 %v1711, %v1709
    %v2010 = vpack.c.b16 %v1714, %v1712
    %v2011 = vpack.c.b16 %v1715, %v1713
    %v2012 = vpack.c.b16 %v1718, %v1716
    %v2013 = vpack.c.b16 %v1719, %v1717
    %v2014 = vpack.c.b16 %v1722, %v1720
    %v2015 = vpack.c.b16 %v1723, %v1721
    %v2016 = vpack.c.b16 %v1726, %v1724
    %v2017 = vpack.c.b16 %v1727, %v1725
    %v2018 = vpack.c.b16 %v1730, %v1728
    %v2019 = vpack.c.b16 %v1731, %v1729
    %v2020 = vpack.c.b16 %v1734, %v1732
    %v2021 = vpack.c.b16 %v1735, %v1733
    %v2022 = vpack.c.b16 %v1738, %v1736
    %v2023 = vpack.c.b16 %v1739, %v1737
    %v2024 = vpack.c.b16 %v1742, %v1740
    %v2025 = vpack.c.b16 %v1743, %v1741
    %v2026 = vpack.c.b16 %v1746, %v1744
    %v2027 = vpack.c.b16 %v1747, %v1745
    %v2028 = vpack.c.b16 %v1750, %v1748
    %v2029 = vpack.c.b16 %v1751, %v1749
    %v2030 = vpack.c.b16 %v1754, %v1752
    %v2031 = vpack.c.b16 %v1755, %v1753
    %v2032 = vpack.c.b16 %v1758, %v1756
    %v2033 = vpack.c.b16 %v1759, %v1757
    %v2034 = vpack.c.b16 %v1762, %v1760
    %v2035 = vpack.c.b16 %v1763, %v1761
    %v2036 = vpack.c.b16 %v1766, %v1764
    %v2037 = vpack.c.b16 %v1767, %v1765
    %v2038 = vpack.c.b16 %v1770, %v1768
    %v2039 = vpack.c.b16 %v1771, %v1769
    %v2040 = vpack.c.b16 %v1774, %v1772
    %v2041 = vpack.c.b16 %v1775, %v1773
    %v2042 = vpack.c.b16 %v1778, %v1776
    %v2043 = vpack.c.b16 %v1779, %v1777
    %v2044 = vpack.c.b16 %v1782, %v1780
    %v2045 = vpack.c.b16 %v1783, %v1781
    %v2046 = vpack.c.b16 %v1786, %v1784
    %v2047 = vpack.c.b16 %v1787, %v1785
    %v2048 = vpack.c.b16 %v1790, %v1788
    %v2049 = vpack.c.b16 %v1791, %v1789
    %v2050 = vpack.c.b16 %v1794, %v1792
    %v2051 = vpack.c.b16 %v1795, %v1793
    %v2052 = vpack.c.b16 %v1798, %v1796
    %v2053 = vpack.c.b16 %v1799, %v1797
    %v2054 = vpack.c.b16 %v1802, %v1800
    %v2055 = vpack.c.b16 %v1803, %v1801
    %v2056 = vpack.c.b16 %v1806, %v1804
    %v2057 = vpack.c.b16 %v1807, %v1805
    %v2058 = vpack.c.b16 %v1810, %v1808
    %v2059 = vpack.c.b16 %v1811, %v1809
    %v2060 = vpack.c.b16 %v1814, %v1812
    %v2061 = vpack.c.b16 %v1815, %v1813
    %v2062 = vpack.c.b16 %v1818, %v1816
    %v2063 = vpack.c.b16 %v1819, %v1817
    %v2064 = vpack.c.b16 %v1822, %v1820
    %v2065 = vpack.c.b16 %v1823, %v1821
    %v2066 = vpack.c.b16 %v1826, %v1824
    %v2067 = vpack.c.b16 %v1827, %v1825
    %v2068 = vpack.c.b16 %v1830, %v1828
    %v2069 = vpack.c.b16 %v1831, %v1829
    %v2070 = vpack.c.b16 %v1834, %v1832
    %v2071 = vpack.c.b16 %v1835, %v1833
    %v2072 = vpack.c.b16 %v1838, %v1836
    %v2073 = vpack.c.b16 %v1839, %v1837
    %v2074 = vpack.c.b16 %v1842, %v1840
    %v2075 = vpack.c.b16 %v1843, %v1841
    %v2076 = vpack.c.b16 %v1846, %v1844
    %v2077 = vpack.c.b16 %v1847, %v1845
    %v2078 = vpack.c.b16 %v1850, %v1848
    %v2079 = vpack.c.b16 %v1851, %v1849
    %v2080 = vpack.c.b16 %v1854, %v1852
    %v2081 = vpack.c.b16 %v1855, %v1853
    %v2082 = vpack.c.b16 %v1858, %v1856
    %v2083 = vpack.c.b16 %v1859, %v1857
    %v2084 = vpack.c.b16 %v1862, %v1860
    %v2085 = vpack.c.b16 %v1863, %v1861
    %v2086 = vpack.c.b16 %v1866, %v1864
    %v2087 = vpack.c.b16 %v1867, %v1865
    %v2088 = vpack.c.b16 %v1870, %v1868
    %v2089 = vpack.c.b16 %v1871, %v1869
    %v2090 = vpack.c.b16 %v1874, %v1872
    %v2091 = vpack.c.b16 %v1875, %v1873
    %v2092 = vpack.c.b16 %v1878, %v1876
    %v2093 = vpack.c.b16 %v1879, %v1877
    %v2094 = vpack.c.b16 %v1882, %v1880
    %v2095 = vpack.c.b16 %v1883, %v1881
    %v2096 = vpack.c.b16 %v1886, %v1884
    %v2097 = vpack.c.b16 %v1887, %v1885
    %v2098 = vpack.c.b16 %v1890, %v1888
    %v2099 = vpack.c.b16 %v1891, %v1889
    %2308 = vmatpush.bf16.msra.mxu0 %v1906
    %2309 = vmatpush.bf16.msra.mxu0 %v1904
    %2310 = vmatpush.bf16.msra.mxu0 %v1902
    %2311 = vmatpush.bf16.msra.mxu0 %v1900
    %2312 = vmatpush.bf16.msra.mxu0 %v1898
    %2313 = vmatpush.bf16.msra.mxu0 %v1896
    %2314 = vmatpush.bf16.msra.mxu0 %v1894
    %2315 = vmatpush.bf16.msra.mxu0 %v1892
    %2316 = vmatmul.bf16.gmra.mxu0 %v1242
    %v2317 = vpop.f32.mrf.mxu0
    %v2318 = vadd.f32 %v1198, %v2317
    %v2319 = vpop.f32.mrf.mxu0
    %v2320 = vadd.f32 %v1198, %v2319
    %2321 = vdwg.mxu0
    %2322 = vmatpush.bf16.msra.mxu0 %v1922
    %2323 = vmatpush.bf16.msra.mxu0 %v1920
    %2324 = vmatpush.bf16.msra.mxu0 %v1918
    %2325 = vmatpush.bf16.msra.mxu0 %v1916
    %2326 = vmatpush.bf16.msra.mxu0 %v1914
    %2327 = vmatpush.bf16.msra.mxu0 %v1912
    %2328 = vmatpush.bf16.msra.mxu0 %v1910
    %2329 = vmatpush.bf16.msra.mxu0 %v1908
    %2330 = vmatmul.bf16.gmra.mxu0 %v1243
    %v2331 = vpop.f32.mrf.mxu0
    %v2332 = vadd.f32 %v2318, %v2331
    %v2333 = vpop.f32.mrf.mxu0
    %v2334 = vadd.f32 %v2320, %v2333
    %2335 = vdwg.mxu0
    %2336 = vmatpush.bf16.msra.mxu0 %v1938
    %2337 = vmatpush.bf16.msra.mxu0 %v1936
    %2338 = vmatpush.bf16.msra.mxu0 %v1934
    %2339 = vmatpush.bf16.msra.mxu0 %v1932
    %2340 = vmatpush.bf16.msra.mxu0 %v1930
    %2341 = vmatpush.bf16.msra.mxu0 %v1928
    %2342 = vmatpush.bf16.msra.mxu0 %v1926
    %2343 = vmatpush.bf16.msra.mxu0 %v1924
    %2344 = vmatmul.bf16.gmra.mxu0 %v1244
    %v2345 = vpop.f32.mrf.mxu0
    %v2346 = vadd.f32 %v2332, %v2345
    %v2347 = vpop.f32.mrf.mxu0
    %v2348 = vadd.f32 %v2334, %v2347
    %2349 = vdwg.mxu0
    %2350 = vmatpush.bf16.msra.mxu0 %v1954
    %2351 = vmatpush.bf16.msra.mxu0 %v1952
    %2352 = vmatpush.bf16.msra.mxu0 %v1950
    %2353 = vmatpush.bf16.msra.mxu0 %v1948
    %2354 = vmatpush.bf16.msra.mxu0 %v1946
    %2355 = vmatpush.bf16.msra.mxu0 %v1944
    %2356 = vmatpush.bf16.msra.mxu0 %v1942
    %2357 = vmatpush.bf16.msra.mxu0 %v1940
    %2358 = vmatmul.bf16.gmra.mxu0 %v1245
    %v2359 = vpop.f32.mrf.mxu0
    %v2360 = vadd.f32 %v2346, %v2359
    %v2361 = vpop.f32.mrf.mxu0
    %v2362 = vadd.f32 %v2348, %v2361
    %2363 = vdwg.mxu0
    %2364 = vmatpush.bf16.msra.mxu0 %v1970
    %2365 = vmatpush.bf16.msra.mxu0 %v1968
    %2366 = vmatpush.bf16.msra.mxu0 %v1966
    %2367 = vmatpush.bf16.msra.mxu0 %v1964
    %2368 = vmatpush.bf16.msra.mxu0 %v1962
    %2369 = vmatpush.bf16.msra.mxu0 %v1960
    %2370 = vmatpush.bf16.msra.mxu0 %v1958
    %2371 = vmatpush.bf16.msra.mxu0 %v1956
    %2372 = vmatmul.bf16.gmra.mxu0 %v1246
    %v2373 = vpop.f32.mrf.mxu0
    %v2374 = vadd.f32 %v2360, %v2373
    %v2375 = vpop.f32.mrf.mxu0
    %v2376 = vadd.f32 %v2362, %v2375
    %2377 = vdwg.mxu0
    %2378 = vmatpush.bf16.msra.mxu0 %v1986
    %2379 = vmatpush.bf16.msra.mxu0 %v1984
    %2380 = vmatpush.bf16.msra.mxu0 %v1982
    %2381 = vmatpush.bf16.msra.mxu0 %v1980
    %2382 = vmatpush.bf16.msra.mxu0 %v1978
    %2383 = vmatpush.bf16.msra.mxu0 %v1976
    %2384 = vmatpush.bf16.msra.mxu0 %v1974
    %2385 = vmatpush.bf16.msra.mxu0 %v1972
    %2386 = vmatmul.bf16.gmra.mxu0 %v1247
    %v2387 = vpop.f32.mrf.mxu0
    %v2388 = vadd.f32 %v2374, %v2387
    %v2389 = vpop.f32.mrf.mxu0
    %v2390 = vadd.f32 %v2376, %v2389
    %2391 = vdwg.mxu0
    %2392 = vmatpush.bf16.msra.mxu0 %v2002
    %2393 = vmatpush.bf16.msra.mxu0 %v2000
    %2394 = vmatpush.bf16.msra.mxu0 %v1998
    %2395 = vmatpush.bf16.msra.mxu0 %v1996
    %2396 = vmatpush.bf16.msra.mxu0 %v1994
    %2397 = vmatpush.bf16.msra.mxu0 %v1992
    %2398 = vmatpush.bf16.msra.mxu0 %v1990
    %2399 = vmatpush.bf16.msra.mxu0 %v1988
    %2400 = vmatmul.bf16.gmra.mxu0 %v1248
    %v2401 = vpop.f32.mrf.mxu0
    %v2402 = vadd.f32 %v2388, %v2401
    %v2403 = vpop.f32.mrf.mxu0
    %v2404 = vadd.f32 %v2390, %v2403
    %2405 = vdwg.mxu0
    %2406 = vmatpush.bf16.msra.mxu0 %v2018
    %2407 = vmatpush.bf16.msra.mxu0 %v2016
    %2408 = vmatpush.bf16.msra.mxu0 %v2014
    %2409 = vmatpush.bf16.msra.mxu0 %v2012
    %2410 = vmatpush.bf16.msra.mxu0 %v2010
    %2411 = vmatpush.bf16.msra.mxu0 %v2008
    %2412 = vmatpush.bf16.msra.mxu0 %v2006
    %2413 = vmatpush.bf16.msra.mxu0 %v2004
    %2414 = vmatmul.bf16.gmra.mxu0 %v1249
    %v2415 = vpop.f32.mrf.mxu0
    %v2416 = vadd.f32 %v2402, %v2415
    %v2417 = vpop.f32.mrf.mxu0
    %v2418 = vadd.f32 %v2404, %v2417
    %2419 = vdwg.mxu0
    %2420 = vmatpush.bf16.msra.mxu0 %v2034
    %2421 = vmatpush.bf16.msra.mxu0 %v2032
    %2422 = vmatpush.bf16.msra.mxu0 %v2030
    %2423 = vmatpush.bf16.msra.mxu0 %v2028
    %2424 = vmatpush.bf16.msra.mxu0 %v2026
    %2425 = vmatpush.bf16.msra.mxu0 %v2024
    %2426 = vmatpush.bf16.msra.mxu0 %v2022
    %2427 = vmatpush.bf16.msra.mxu0 %v2020
    %2428 = vmatmul.bf16.gmra.mxu0 %v1250
    %v2429 = vpop.f32.mrf.mxu0
    %v2430 = vadd.f32 %v2416, %v2429
    %v2431 = vpop.f32.mrf.mxu0
    %v2432 = vadd.f32 %v2418, %v2431
    %2433 = vdwg.mxu0
    %2434 = vmatpush.bf16.msra.mxu0 %v2050
    %2435 = vmatpush.bf16.msra.mxu0 %v2048
    %2436 = vmatpush.bf16.msra.mxu0 %v2046
    %2437 = vmatpush.bf16.msra.mxu0 %v2044
    %2438 = vmatpush.bf16.msra.mxu0 %v2042
    %2439 = vmatpush.bf16.msra.mxu0 %v2040
    %2440 = vmatpush.bf16.msra.mxu0 %v2038
    %2441 = vmatpush.bf16.msra.mxu0 %v2036
    %2442 = vmatmul.bf16.gmra.mxu0 %v1251
    %v2443 = vpop.f32.mrf.mxu0
    %v2444 = vadd.f32 %v2430, %v2443
    %v2445 = vpop.f32.mrf.mxu0
    %v2446 = vadd.f32 %v2432, %v2445
    %2447 = vdwg.mxu0
    %2448 = vmatpush.bf16.msra.mxu0 %v2066
    %2449 = vmatpush.bf16.msra.mxu0 %v2064
    %2450 = vmatpush.bf16.msra.mxu0 %v2062
    %2451 = vmatpush.bf16.msra.mxu0 %v2060
    %2452 = vmatpush.bf16.msra.mxu0 %v2058
    %2453 = vmatpush.bf16.msra.mxu0 %v2056
    %2454 = vmatpush.bf16.msra.mxu0 %v2054
    %2455 = vmatpush.bf16.msra.mxu0 %v2052
    %2456 = vmatmul.bf16.gmra.mxu0 %v1252
    %v2457 = vpop.f32.mrf.mxu0
    %v2458 = vadd.f32 %v2444, %v2457
    %v2459 = vpop.f32.mrf.mxu0
    %v2460 = vadd.f32 %v2446, %v2459
    %2461 = vdwg.mxu0
    %2462 = vmatpush.bf16.msra.mxu0 %v2082
    %2463 = vmatpush.bf16.msra.mxu0 %v2080
    %2464 = vmatpush.bf16.msra.mxu0 %v2078
    %2465 = vmatpush.bf16.msra.mxu0 %v2076
    %2466 = vmatpush.bf16.msra.mxu0 %v2074
    %2467 = vmatpush.bf16.msra.mxu0 %v2072
    %2468 = vmatpush.bf16.msra.mxu0 %v2070
    %2469 = vmatpush.bf16.msra.mxu0 %v2068
    %2470 = vmatmul.bf16.gmra.mxu0 %v1253
    %v2471 = vpop.f32.mrf.mxu0
    %v2472 = vadd.f32 %v2458, %v2471
    %v2473 = vpop.f32.mrf.mxu0
    %v2474 = vadd.f32 %v2460, %v2473
    %2475 = vdwg.mxu0
    %2476 = vmatpush.bf16.msra.mxu0 %v2098
    %2477 = vmatpush.bf16.msra.mxu0 %v2096
    %2478 = vmatpush.bf16.msra.mxu0 %v2094
    %2479 = vmatpush.bf16.msra.mxu0 %v2092
    %2480 = vmatpush.bf16.msra.mxu0 %v2090
    %2481 = vmatpush.bf16.msra.mxu0 %v2088
    %2482 = vmatpush.bf16.msra.mxu0 %v2086
    %2483 = vmatpush.bf16.msra.mxu0 %v2084
    %2484 = vmatmul.bf16.gmra.mxu0 %v1254
    %v2485 = vpop.f32.mrf.mxu0
    %v2486 = vadd.f32 %v2472, %v2485
    %v2487 = vpop.f32.mrf.mxu0
    %v2488 = vadd.f32 %v2474, %v2487
    %2489 = vdwg.mxu0
    %2490 = vmatpush.bf16.msra.mxu0 %v1907
    %2491 = vmatpush.bf16.msra.mxu0 %v1905
    %2492 = vmatpush.bf16.msra.mxu0 %v1903
    %2493 = vmatpush.bf16.msra.mxu0 %v1901
    %2494 = vmatpush.bf16.msra.mxu0 %v1899
    %2495 = vmatpush.bf16.msra.mxu0 %v1897
    %2496 = vmatpush.bf16.msra.mxu0 %v1895
    %2497 = vmatpush.bf16.msra.mxu0 %v1893
    %2498 = vmatmul.bf16.gmra.mxu0 %v1242
    %v2499 = vpop.f32.mrf.mxu0
    %v2500 = vadd.f32 %v1199, %v2499
    %v2501 = vpop.f32.mrf.mxu0
    %v2502 = vadd.f32 %v1199, %v2501
    %2503 = vdwg.mxu0
    %2504 = vmatpush.bf16.msra.mxu0 %v1923
    %2505 = vmatpush.bf16.msra.mxu0 %v1921
    %2506 = vmatpush.bf16.msra.mxu0 %v1919
    %2507 = vmatpush.bf16.msra.mxu0 %v1917
    %2508 = vmatpush.bf16.msra.mxu0 %v1915
    %2509 = vmatpush.bf16.msra.mxu0 %v1913
    %2510 = vmatpush.bf16.msra.mxu0 %v1911
    %2511 = vmatpush.bf16.msra.mxu0 %v1909
    %2512 = vmatmul.bf16.gmra.mxu0 %v1243
    %v2513 = vpop.f32.mrf.mxu0
    %v2514 = vadd.f32 %v2500, %v2513
    %v2515 = vpop.f32.mrf.mxu0
    %v2516 = vadd.f32 %v2502, %v2515
    %2517 = vdwg.mxu0
    %2518 = vmatpush.bf16.msra.mxu0 %v1939
    %2519 = vmatpush.bf16.msra.mxu0 %v1937
    %2520 = vmatpush.bf16.msra.mxu0 %v1935
    %2521 = vmatpush.bf16.msra.mxu0 %v1933
    %2522 = vmatpush.bf16.msra.mxu0 %v1931
    %2523 = vmatpush.bf16.msra.mxu0 %v1929
    %2524 = vmatpush.bf16.msra.mxu0 %v1927
    %2525 = vmatpush.bf16.msra.mxu0 %v1925
    %2526 = vmatmul.bf16.gmra.mxu0 %v1244
    %v2527 = vpop.f32.mrf.mxu0
    %v2528 = vadd.f32 %v2514, %v2527
    %v2529 = vpop.f32.mrf.mxu0
    %v2530 = vadd.f32 %v2516, %v2529
    %2531 = vdwg.mxu0
    %2532 = vmatpush.bf16.msra.mxu0 %v1955
    %2533 = vmatpush.bf16.msra.mxu0 %v1953
    %2534 = vmatpush.bf16.msra.mxu0 %v1951
    %2535 = vmatpush.bf16.msra.mxu0 %v1949
    %2536 = vmatpush.bf16.msra.mxu0 %v1947
    %2537 = vmatpush.bf16.msra.mxu0 %v1945
    %2538 = vmatpush.bf16.msra.mxu0 %v1943
    %2539 = vmatpush.bf16.msra.mxu0 %v1941
    %2540 = vmatmul.bf16.gmra.mxu0 %v1245
    %v2541 = vpop.f32.mrf.mxu0
    %v2542 = vadd.f32 %v2528, %v2541
    %v2543 = vpop.f32.mrf.mxu0
    %v2544 = vadd.f32 %v2530, %v2543
    %2545 = vdwg.mxu0
    %2546 = vmatpush.bf16.msra.mxu0 %v1971
    %2547 = vmatpush.bf16.msra.mxu0 %v1969
    %2548 = vmatpush.bf16.msra.mxu0 %v1967
    %2549 = vmatpush.bf16.msra.mxu0 %v1965
    %2550 = vmatpush.bf16.msra.mxu0 %v1963
    %2551 = vmatpush.bf16.msra.mxu0 %v1961
    %2552 = vmatpush.bf16.msra.mxu0 %v1959
    %2553 = vmatpush.bf16.msra.mxu0 %v1957
    %2554 = vmatmul.bf16.gmra.mxu0 %v1246
    %v2555 = vpop.f32.mrf.mxu0
    %v2556 = vadd.f32 %v2542, %v2555
    %v2557 = vpop.f32.mrf.mxu0
    %v2558 = vadd.f32 %v2544, %v2557
    %2559 = vdwg.mxu0
    %2560 = vmatpush.bf16.msra.mxu0 %v1987
    %2561 = vmatpush.bf16.msra.mxu0 %v1985
    %2562 = vmatpush.bf16.msra.mxu0 %v1983
    %2563 = vmatpush.bf16.msra.mxu0 %v1981
    %2564 = vmatpush.bf16.msra.mxu0 %v1979
    %2565 = vmatpush.bf16.msra.mxu0 %v1977
    %2566 = vmatpush.bf16.msra.mxu0 %v1975
    %2567 = vmatpush.bf16.msra.mxu0 %v1973
    %2568 = vmatmul.bf16.gmra.mxu0 %v1247
    %v2569 = vpop.f32.mrf.mxu0
    %v2570 = vadd.f32 %v2556, %v2569
    %v2571 = vpop.f32.mrf.mxu0
    %v2572 = vadd.f32 %v2558, %v2571
    %2573 = vdwg.mxu0
    %2574 = vmatpush.bf16.msra.mxu0 %v2003
    %2575 = vmatpush.bf16.msra.mxu0 %v2001
    %2576 = vmatpush.bf16.msra.mxu0 %v1999
    %2577 = vmatpush.bf16.msra.mxu0 %v1997
    %2578 = vmatpush.bf16.msra.mxu0 %v1995
    %2579 = vmatpush.bf16.msra.mxu0 %v1993
    %2580 = vmatpush.bf16.msra.mxu0 %v1991
    %2581 = vmatpush.bf16.msra.mxu0 %v1989
    %2582 = vmatmul.bf16.gmra.mxu0 %v1248
    %v2583 = vpop.f32.mrf.mxu0
    %v2584 = vadd.f32 %v2570, %v2583
    %v2585 = vpop.f32.mrf.mxu0
    %v2586 = vadd.f32 %v2572, %v2585
    %2587 = vdwg.mxu0
    %2588 = vmatpush.bf16.msra.mxu0 %v2019
    %2589 = vmatpush.bf16.msra.mxu0 %v2017
    %2590 = vmatpush.bf16.msra.mxu0 %v2015
    %2591 = vmatpush.bf16.msra.mxu0 %v2013
    %2592 = vmatpush.bf16.msra.mxu0 %v2011
    %2593 = vmatpush.bf16.msra.mxu0 %v2009
    %2594 = vmatpush.bf16.msra.mxu0 %v2007
    %2595 = vmatpush.bf16.msra.mxu0 %v2005
    %2596 = vmatmul.bf16.gmra.mxu0 %v1249
    %v2597 = vpop.f32.mrf.mxu0
    %v2598 = vadd.f32 %v2584, %v2597
    %v2599 = vpop.f32.mrf.mxu0
    %v2600 = vadd.f32 %v2586, %v2599
    %2601 = vdwg.mxu0
    %2602 = vmatpush.bf16.msra.mxu0 %v2035
    %2603 = vmatpush.bf16.msra.mxu0 %v2033
    %2604 = vmatpush.bf16.msra.mxu0 %v2031
    %2605 = vmatpush.bf16.msra.mxu0 %v2029
    %2606 = vmatpush.bf16.msra.mxu0 %v2027
    %2607 = vmatpush.bf16.msra.mxu0 %v2025
    %2608 = vmatpush.bf16.msra.mxu0 %v2023
    %2609 = vmatpush.bf16.msra.mxu0 %v2021
    %2610 = vmatmul.bf16.gmra.mxu0 %v1250
    %v2611 = vpop.f32.mrf.mxu0
    %v2612 = vadd.f32 %v2598, %v2611
    %v2613 = vpop.f32.mrf.mxu0
    %v2614 = vadd.f32 %v2600, %v2613
    %2615 = vdwg.mxu0
    %2616 = vmatpush.bf16.msra.mxu0 %v2051
    %2617 = vmatpush.bf16.msra.mxu0 %v2049
    %2618 = vmatpush.bf16.msra.mxu0 %v2047
    %2619 = vmatpush.bf16.msra.mxu0 %v2045
    %2620 = vmatpush.bf16.msra.mxu0 %v2043
    %2621 = vmatpush.bf16.msra.mxu0 %v2041
    %2622 = vmatpush.bf16.msra.mxu0 %v2039
    %2623 = vmatpush.bf16.msra.mxu0 %v2037
    %2624 = vmatmul.bf16.gmra.mxu0 %v1251
    %v2625 = vpop.f32.mrf.mxu0
    %v2626 = vadd.f32 %v2612, %v2625
    %v2627 = vpop.f32.mrf.mxu0
    %v2628 = vadd.f32 %v2614, %v2627
    %2629 = vdwg.mxu0
    %2630 = vmatpush.bf16.msra.mxu0 %v2067
    %2631 = vmatpush.bf16.msra.mxu0 %v2065
    %2632 = vmatpush.bf16.msra.mxu0 %v2063
    %2633 = vmatpush.bf16.msra.mxu0 %v2061
    %2634 = vmatpush.bf16.msra.mxu0 %v2059
    %2635 = vmatpush.bf16.msra.mxu0 %v2057
    %2636 = vmatpush.bf16.msra.mxu0 %v2055
    %2637 = vmatpush.bf16.msra.mxu0 %v2053
    %2638 = vmatmul.bf16.gmra.mxu0 %v1252
    %v2639 = vpop.f32.mrf.mxu0
    %v2640 = vadd.f32 %v2626, %v2639
    %v2641 = vpop.f32.mrf.mxu0
    %v2642 = vadd.f32 %v2628, %v2641
    %2643 = vdwg.mxu0
    %2644 = vmatpush.bf16.msra.mxu0 %v2083
    %2645 = vmatpush.bf16.msra.mxu0 %v2081
    %2646 = vmatpush.bf16.msra.mxu0 %v2079
    %2647 = vmatpush.bf16.msra.mxu0 %v2077
    %2648 = vmatpush.bf16.msra.mxu0 %v2075
    %2649 = vmatpush.bf16.msra.mxu0 %v2073
    %2650 = vmatpush.bf16.msra.mxu0 %v2071
    %2651 = vmatpush.bf16.msra.mxu0 %v2069
    %2652 = vmatmul.bf16.gmra.mxu0 %v1253
    %v2653 = vpop.f32.mrf.mxu0
    %v2654 = vadd.f32 %v2640, %v2653
    %v2655 = vpop.f32.mrf.mxu0
    %v2656 = vadd.f32 %v2642, %v2655
    %2657 = vdwg.mxu0
    %2658 = vmatpush.bf16.msra.mxu0 %v2099
    %2659 = vmatpush.bf16.msra.mxu0 %v2097
    %2660 = vmatpush.bf16.msra.mxu0 %v2095
    %2661 = vmatpush.bf16.msra.mxu0 %v2093
    %2662 = vmatpush.bf16.msra.mxu0 %v2091
    %2663 = vmatpush.bf16.msra.mxu0 %v2089
    %2664 = vmatpush.bf16.msra.mxu0 %v2087
    %2665 = vmatpush.bf16.msra.mxu0 %v2085
    %2666 = vmatmul.bf16.gmra.mxu0 %v1254
    %v2667 = vpop.f32.mrf.mxu0
    %v2668 = vadd.f32 %v2654, %v2667
    %v2669 = vpop.f32.mrf.mxu0
    %v2670 = vadd.f32 %v2656, %v2669
    %2671 = vdwg.mxu0
    %v2672 = vld [vmem:[#allocation12] sm:$0xf]
    %v2673 = vld [vmem:[#allocation12 + $0x4] sm:$0xf]
    %v2674 = vld [vmem:[#allocation12 + $0x8] sm:$0xf]
    %v2675 = vld [vmem:[#allocation12 + $0xc] sm:$0xf]
    %v2676 = vld [vmem:[#allocation12 + $0x10] sm:$0xf]
    %v2677 = vld [vmem:[#allocation12 + $0x14] sm:$0xf]
    %v2678 = vld [vmem:[#allocation12 + $0x18] sm:$0xf]
    %v2679 = vld [vmem:[#allocation12 + $0x1c] sm:$0xf]
    %v2680 = vld [vmem:[#allocation12 + $0x20] sm:$0xf]
    %v2681 = vld [vmem:[#allocation12 + $0x24] sm:$0xf]
    %v2682 = vld [vmem:[#allocation12 + $0x28] sm:$0xf]
    %v2683 = vld [vmem:[#allocation12 + $0x2c] sm:$0xf]
    %v2684 = vld [vmem:[#allocation12 + $0x30] sm:$0xf]
    %v2685 = vld [vmem:[#allocation12 + $0x34] sm:$0xf]
    %v2686 = vld [vmem:[#allocation12 + $0x38] sm:$0xf]
    %v2687 = vld [vmem:[#allocation12 + $0x3c] sm:$0xf]
    %v2688 = vld [vmem:[#allocation12 + $0x40] sm:$0xf]
    %v2689 = vld [vmem:[#allocation12 + $0x44] sm:$0xf]
    %v2690 = vld [vmem:[#allocation12 + $0x48] sm:$0xf]
    %v2691 = vld [vmem:[#allocation12 + $0x4c] sm:$0xf]
    %v2692 = vld [vmem:[#allocation12 + $0x50] sm:$0xf]
    %v2693 = vld [vmem:[#allocation12 + $0x54] sm:$0xf]
    %v2694 = vld [vmem:[#allocation12 + $0x58] sm:$0xf]
    %v2695 = vld [vmem:[#allocation12 + $0x5c] sm:$0xf]
    %v2696 = vld [vmem:[#allocation12 + $0x60] sm:$0xf]
    %v2697 = vld [vmem:[#allocation12 + $0x64] sm:$0xf]
    %v2698 = vld [vmem:[#allocation12 + $0x68] sm:$0xf]
    %v2699 = vld [vmem:[#allocation12 + $0x6c] sm:$0xf]
    %v2700 = vld [vmem:[#allocation12 + $0x70] sm:$0xf]
    %v2701 = vld [vmem:[#allocation12 + $0x74] sm:$0xf]
    %v2702 = vld [vmem:[#allocation12 + $0x78] sm:$0xf]
    %v2703 = vld [vmem:[#allocation12 + $0x7c] sm:$0xf]
    %v2704 = vld [vmem:[#allocation12 + $0x80] sm:$0xf]
    %v2705 = vld [vmem:[#allocation12 + $0x84] sm:$0xf]
    %v2706 = vld [vmem:[#allocation12 + $0x88] sm:$0xf]
    %v2707 = vld [vmem:[#allocation12 + $0x8c] sm:$0xf]
    %v2708 = vld [vmem:[#allocation12 + $0x90] sm:$0xf]
    %v2709 = vld [vmem:[#allocation12 + $0x94] sm:$0xf]
    %v2710 = vld [vmem:[#allocation12 + $0x98] sm:$0xf]
    %v2711 = vld [vmem:[#allocation12 + $0x9c] sm:$0xf]
    %v2712 = vld [vmem:[#allocation12 + $0xa0] sm:$0xf]
    %v2713 = vld [vmem:[#allocation12 + $0xa4] sm:$0xf]
    %v2714 = vld [vmem:[#allocation12 + $0xa8] sm:$0xf]
    %v2715 = vld [vmem:[#allocation12 + $0xac] sm:$0xf]
    %v2716 = vld [vmem:[#allocation12 + $0xb0] sm:$0xf]
    %v2717 = vld [vmem:[#allocation12 + $0xb4] sm:$0xf]
    %v2718 = vld [vmem:[#allocation12 + $0xb8] sm:$0xf]
    %v2719 = vld [vmem:[#allocation12 + $0xbc] sm:$0xf]
    %v2720 = vld [vmem:[#allocation12 + $0xc0] sm:$0xf]
    %v2721 = vld [vmem:[#allocation12 + $0xc4] sm:$0xf]
    %v2722 = vld [vmem:[#allocation12 + $0xc8] sm:$0xf]
    %v2723 = vld [vmem:[#allocation12 + $0xcc] sm:$0xf]
    %v2724 = vld [vmem:[#allocation12 + $0xd0] sm:$0xf]
    %v2725 = vld [vmem:[#allocation12 + $0xd4] sm:$0xf]
    %v2726 = vld [vmem:[#allocation12 + $0xd8] sm:$0xf]
    %v2727 = vld [vmem:[#allocation12 + $0xdc] sm:$0xf]
    %v2728 = vld [vmem:[#allocation12 + $0xe0] sm:$0xf]
    %v2729 = vld [vmem:[#allocation12 + $0xe4] sm:$0xf]
    %v2730 = vld [vmem:[#allocation12 + $0xe8] sm:$0xf]
    %v2731 = vld [vmem:[#allocation12 + $0xec] sm:$0xf]
    %v2732 = vld [vmem:[#allocation12 + $0xf0] sm:$0xf]
    %v2733 = vld [vmem:[#allocation12 + $0xf4] sm:$0xf]
    %v2734 = vld [vmem:[#allocation12 + $0xf8] sm:$0xf]
    %v2735 = vld [vmem:[#allocation12 + $0xfc] sm:$0xf]
    %v2736 = vld [vmem:[#allocation12 + $0x100] sm:$0xf]
    %v2737 = vld [vmem:[#allocation12 + $0x104] sm:$0xf]
    %v2738 = vld [vmem:[#allocation12 + $0x108] sm:$0xf]
    %v2739 = vld [vmem:[#allocation12 + $0x10c] sm:$0xf]
    %v2740 = vld [vmem:[#allocation12 + $0x110] sm:$0xf]
    %v2741 = vld [vmem:[#allocation12 + $0x114] sm:$0xf]
    %v2742 = vld [vmem:[#allocation12 + $0x118] sm:$0xf]
    %v2743 = vld [vmem:[#allocation12 + $0x11c] sm:$0xf]
    %v2744 = vld [vmem:[#allocation12 + $0x120] sm:$0xf]
    %v2745 = vld [vmem:[#allocation12 + $0x124] sm:$0xf]
    %v2746 = vld [vmem:[#allocation12 + $0x128] sm:$0xf]
    %v2747 = vld [vmem:[#allocation12 + $0x12c] sm:$0xf]
    %v2748 = vld [vmem:[#allocation12 + $0x130] sm:$0xf]
    %v2749 = vld [vmem:[#allocation12 + $0x134] sm:$0xf]
    %v2750 = vld [vmem:[#allocation12 + $0x138] sm:$0xf]
    %v2751 = vld [vmem:[#allocation12 + $0x13c] sm:$0xf]
    %v2752 = vld [vmem:[#allocation12 + $0x140] sm:$0xf]
    %v2753 = vld [vmem:[#allocation12 + $0x144] sm:$0xf]
    %v2754 = vld [vmem:[#allocation12 + $0x148] sm:$0xf]
    %v2755 = vld [vmem:[#allocation12 + $0x14c] sm:$0xf]
    %v2756 = vld [vmem:[#allocation12 + $0x150] sm:$0xf]
    %v2757 = vld [vmem:[#allocation12 + $0x154] sm:$0xf]
    %v2758 = vld [vmem:[#allocation12 + $0x158] sm:$0xf]
    %v2759 = vld [vmem:[#allocation12 + $0x15c] sm:$0xf]
    %v2760 = vld [vmem:[#allocation12 + $0x160] sm:$0xf]
    %v2761 = vld [vmem:[#allocation12 + $0x164] sm:$0xf]
    %v2762 = vld [vmem:[#allocation12 + $0x168] sm:$0xf]
    %v2763 = vld [vmem:[#allocation12 + $0x16c] sm:$0xf]
    %v2764 = vld [vmem:[#allocation12 + $0x170] sm:$0xf]
    %v2765 = vld [vmem:[#allocation12 + $0x174] sm:$0xf]
    %v2766 = vld [vmem:[#allocation12 + $0x178] sm:$0xf]
    %v2767 = vld [vmem:[#allocation12 + $0x17c] sm:$0xf]
    %v2768 = vld [vmem:[#allocation14] sm:$0x1]
    %v2770 = vperm.slane %v2768, 0
    %v2778 = vunpack.c.h.b16 %v974
    %v2779 = vunpack.c.l.b16 %v975
    %v2780 = vunpack.c.h.b16 %v975
    %v2781 = vunpack.c.l.b16 %v976
    %v2782 = vunpack.c.h.b16 %v976
    %v2783 = vunpack.c.l.b16 %v977
    %v2784 = vunpack.c.h.b16 %v984
    %v2785 = vunpack.c.l.b16 %v985
    %v2786 = vunpack.c.h.b16 %v985
    %v2787 = vunpack.c.l.b16 %v986
    %v2788 = vunpack.c.h.b16 %v986
    %v2789 = vunpack.c.l.b16 %v987
    %v2790 = vpack.c.b16 %v2784, %v2778
    %v2791 = vpack.c.b16 %v2785, %v2779
    %v2792 = vpack.c.b16 %v2786, %v2780
    %v2793 = vpack.c.b16 %v2787, %v2781
    %v2794 = vpack.c.b16 %v2788, %v2782
    %v2795 = vpack.c.b16 %v2789, %v2783
    %v2898 = vunpack.c.l.b16 %v2672
    %v2899 = vunpack.c.l.b16 %v2673
    %v2900 = vunpack.c.l.b16 %v2674
    %v2901 = vunpack.c.l.b16 %v2675
    %v2902 = vunpack.c.l.b16 %v2676
    %v2903 = vunpack.c.l.b16 %v2677
    %v2904 = vunpack.c.l.b16 %v2678
    %v2905 = vunpack.c.l.b16 %v2679
    %v2906 = vunpack.c.l.b16 %v2680
    %v2907 = vunpack.c.l.b16 %v2681
    %v2908 = vunpack.c.l.b16 %v2682
    %v2909 = vunpack.c.l.b16 %v2683
    %v2910 = vunpack.c.l.b16 %v2684
    %v2911 = vunpack.c.l.b16 %v2685
    %v2912 = vunpack.c.l.b16 %v2686
    %v2913 = vunpack.c.l.b16 %v2687
    %v2914 = vunpack.c.l.b16 %v2688
    %v2915 = vunpack.c.l.b16 %v2689
    %v2916 = vunpack.c.l.b16 %v2690
    %v2917 = vunpack.c.l.b16 %v2691
    %v2918 = vunpack.c.l.b16 %v2692
    %v2919 = vunpack.c.l.b16 %v2693
    %v2920 = vunpack.c.l.b16 %v2694
    %v2921 = vunpack.c.l.b16 %v2695
    %v2922 = vunpack.c.l.b16 %v2696
    %v2923 = vunpack.c.l.b16 %v2697
    %v2924 = vunpack.c.l.b16 %v2698
    %v2925 = vunpack.c.l.b16 %v2699
    %v2926 = vunpack.c.l.b16 %v2700
    %v2927 = vunpack.c.l.b16 %v2701
    %v2928 = vunpack.c.l.b16 %v2702
    %v2929 = vunpack.c.l.b16 %v2703
    %v2930 = vunpack.c.l.b16 %v2704
    %v2931 = vunpack.c.l.b16 %v2705
    %v2932 = vunpack.c.l.b16 %v2706
    %v2933 = vunpack.c.l.b16 %v2707
    %v2934 = vunpack.c.l.b16 %v2708
    %v2935 = vunpack.c.l.b16 %v2709
    %v2936 = vunpack.c.l.b16 %v2710
    %v2937 = vunpack.c.l.b16 %v2711
    %v2938 = vunpack.c.l.b16 %v2712
    %v2939 = vunpack.c.l.b16 %v2713
    %v2940 = vunpack.c.l.b16 %v2714
    %v2941 = vunpack.c.l.b16 %v2715
    %v2942 = vunpack.c.l.b16 %v2716
    %v2943 = vunpack.c.l.b16 %v2717
    %v2944 = vunpack.c.l.b16 %v2718
    %v2945 = vunpack.c.l.b16 %v2719
    %v2946 = vunpack.c.l.b16 %v2720
    %v2947 = vunpack.c.l.b16 %v2721
    %v2948 = vunpack.c.l.b16 %v2722
    %v2949 = vunpack.c.l.b16 %v2723
    %v2950 = vunpack.c.l.b16 %v2724
    %v2951 = vunpack.c.l.b16 %v2725
    %v2952 = vunpack.c.l.b16 %v2726
    %v2953 = vunpack.c.l.b16 %v2727
    %v2954 = vunpack.c.l.b16 %v2728
    %v2955 = vunpack.c.l.b16 %v2729
    %v2956 = vunpack.c.l.b16 %v2730
    %v2957 = vunpack.c.l.b16 %v2731
    %v2958 = vunpack.c.l.b16 %v2732
    %v2959 = vunpack.c.l.b16 %v2733
    %v2960 = vunpack.c.l.b16 %v2734
    %v2961 = vunpack.c.l.b16 %v2735
    %v2962 = vunpack.c.l.b16 %v2736
    %v2963 = vunpack.c.l.b16 %v2737
    %v2964 = vunpack.c.l.b16 %v2738
    %v2965 = vunpack.c.l.b16 %v2739
    %v2966 = vunpack.c.l.b16 %v2740
    %v2967 = vunpack.c.l.b16 %v2741
    %v2968 = vunpack.c.l.b16 %v2742
    %v2969 = vunpack.c.l.b16 %v2743
    %v2970 = vunpack.c.l.b16 %v2744
    %v2971 = vunpack.c.l.b16 %v2745
    %v2972 = vunpack.c.l.b16 %v2746
    %v2973 = vunpack.c.l.b16 %v2747
    %v2974 = vunpack.c.l.b16 %v2748
    %v2975 = vunpack.c.l.b16 %v2749
    %v2976 = vunpack.c.l.b16 %v2750
    %v2977 = vunpack.c.l.b16 %v2751
    %v2978 = vunpack.c.l.b16 %v2752
    %v2979 = vunpack.c.l.b16 %v2753
    %v2980 = vunpack.c.l.b16 %v2754
    %v2981 = vunpack.c.l.b16 %v2755
    %v2982 = vunpack.c.l.b16 %v2756
    %v2983 = vunpack.c.l.b16 %v2757
    %v2984 = vunpack.c.l.b16 %v2758
    %v2985 = vunpack.c.l.b16 %v2759
    %v2986 = vunpack.c.l.b16 %v2760
    %v2987 = vunpack.c.l.b16 %v2761
    %v2988 = vunpack.c.l.b16 %v2762
    %v2989 = vunpack.c.l.b16 %v2763
    %v2990 = vunpack.c.l.b16 %v2764
    %v2991 = vunpack.c.l.b16 %v2765
    %v2992 = vunpack.c.l.b16 %v2766
    %v2993 = vunpack.c.l.b16 %v2767
    %v2994 = vpack.c.b16 %v2899, %v2898
    %v2995 = vpack.c.b16 %v2901, %v2900
    %v2996 = vpack.c.b16 %v2903, %v2902
    %v2997 = vpack.c.b16 %v2905, %v2904
    %v2998 = vpack.c.b16 %v2907, %v2906
    %v2999 = vpack.c.b16 %v2909, %v2908
    %v3000 = vpack.c.b16 %v2911, %v2910
    %v3001 = vpack.c.b16 %v2913, %v2912
    %v3002 = vpack.c.b16 %v2915, %v2914
    %v3003 = vpack.c.b16 %v2917, %v2916
    %v3004 = vpack.c.b16 %v2919, %v2918
    %v3005 = vpack.c.b16 %v2921, %v2920
    %v3006 = vpack.c.b16 %v2923, %v2922
    %v3007 = vpack.c.b16 %v2925, %v2924
    %v3008 = vpack.c.b16 %v2927, %v2926
    %v3009 = vpack.c.b16 %v2929, %v2928
    %v3010 = vpack.c.b16 %v2931, %v2930
    %v3011 = vpack.c.b16 %v2933, %v2932
    %v3012 = vpack.c.b16 %v2935, %v2934
    %v3013 = vpack.c.b16 %v2937, %v2936
    %v3014 = vpack.c.b16 %v2939, %v2938
    %v3015 = vpack.c.b16 %v2941, %v2940
    %v3016 = vpack.c.b16 %v2943, %v2942
    %v3017 = vpack.c.b16 %v2945, %v2944
    %v3018 = vpack.c.b16 %v2947, %v2946
    %v3019 = vpack.c.b16 %v2949, %v2948
    %v3020 = vpack.c.b16 %v2951, %v2950
    %v3021 = vpack.c.b16 %v2953, %v2952
    %v3022 = vpack.c.b16 %v2955, %v2954
    %v3023 = vpack.c.b16 %v2957, %v2956
    %v3024 = vpack.c.b16 %v2959, %v2958
    %v3025 = vpack.c.b16 %v2961, %v2960
    %v3026 = vpack.c.b16 %v2963, %v2962
    %v3027 = vpack.c.b16 %v2965, %v2964
    %v3028 = vpack.c.b16 %v2967, %v2966
    %v3029 = vpack.c.b16 %v2969, %v2968
    %v3030 = vpack.c.b16 %v2971, %v2970
    %v3031 = vpack.c.b16 %v2973, %v2972
    %v3032 = vpack.c.b16 %v2975, %v2974
    %v3033 = vpack.c.b16 %v2977, %v2976
    %v3034 = vpack.c.b16 %v2979, %v2978
    %v3035 = vpack.c.b16 %v2981, %v2980
    %v3036 = vpack.c.b16 %v2983, %v2982
    %v3037 = vpack.c.b16 %v2985, %v2984
    %v3038 = vpack.c.b16 %v2987, %v2986
    %v3039 = vpack.c.b16 %v2989, %v2988
    %v3040 = vpack.c.b16 %v2991, %v2990
    %v3041 = vpack.c.b16 %v2993, %v2992
    %3090 = vmatpush.bf16.msra.mxu0 %v3001
    %3091 = vmatpush.bf16.msra.mxu0 %v3000
    %3092 = vmatpush.bf16.msra.mxu0 %v2999
    %3093 = vmatpush.bf16.msra.mxu0 %v2998
    %3094 = vmatpush.bf16.msra.mxu0 %v2997
    %3095 = vmatpush.bf16.msra.mxu0 %v2996
    %3096 = vmatpush.bf16.msra.mxu0 %v2995
    %3097 = vmatpush.bf16.msra.mxu0 %v2994
    %3098 = vmatmul.bf16.gmra.mxu0 %v2790
    %v3099 = vpop.f32.mrf.mxu0
    %v3100 = vadd.f32 %v2770, %v3099
    %v3101 = vpop.f32.mrf.mxu0
    %v3102 = vadd.f32 %v2770, %v3101
    %3103 = vdwg.mxu0
    %3104 = vmatpush.bf16.msra.mxu0 %v3009
    %3105 = vmatpush.bf16.msra.mxu0 %v3008
    %3106 = vmatpush.bf16.msra.mxu0 %v3007
    %3107 = vmatpush.bf16.msra.mxu0 %v3006
    %3108 = vmatpush.bf16.msra.mxu0 %v3005
    %3109 = vmatpush.bf16.msra.mxu0 %v3004
    %3110 = vmatpush.bf16.msra.mxu0 %v3003
    %3111 = vmatpush.bf16.msra.mxu0 %v3002
    %3112 = vmatmul.bf16.gmra.mxu0 %v2791
    %v3113 = vpop.f32.mrf.mxu0
    %v3114 = vadd.f32 %v3100, %v3113
    %v3115 = vpop.f32.mrf.mxu0
    %v3116 = vadd.f32 %v3102, %v3115
    %3117 = vdwg.mxu0
    %3118 = vmatpush.bf16.msra.mxu0 %v3017
    %3119 = vmatpush.bf16.msra.mxu0 %v3016
    %3120 = vmatpush.bf16.msra.mxu0 %v3015
    %3121 = vmatpush.bf16.msra.mxu0 %v3014
    %3122 = vmatpush.bf16.msra.mxu0 %v3013
    %3123 = vmatpush.bf16.msra.mxu0 %v3012
    %3124 = vmatpush.bf16.msra.mxu0 %v3011
    %3125 = vmatpush.bf16.msra.mxu0 %v3010
    %3126 = vmatmul.bf16.gmra.mxu0 %v2792
    %v3127 = vpop.f32.mrf.mxu0
    %v3128 = vadd.f32 %v3114, %v3127
    %v3129 = vpop.f32.mrf.mxu0
    %v3130 = vadd.f32 %v3116, %v3129
    %3131 = vdwg.mxu0
    %3132 = vmatpush.bf16.msra.mxu0 %v3025
    %3133 = vmatpush.bf16.msra.mxu0 %v3024
    %3134 = vmatpush.bf16.msra.mxu0 %v3023
    %3135 = vmatpush.bf16.msra.mxu0 %v3022
    %3136 = vmatpush.bf16.msra.mxu0 %v3021
    %3137 = vmatpush.bf16.msra.mxu0 %v3020
    %3138 = vmatpush.bf16.msra.mxu0 %v3019
    %3139 = vmatpush.bf16.msra.mxu0 %v3018
    %3140 = vmatmul.bf16.gmra.mxu0 %v2793
    %v3141 = vpop.f32.mrf.mxu0
    %v3142 = vadd.f32 %v3128, %v3141
    %v3143 = vpop.f32.mrf.mxu0
    %v3144 = vadd.f32 %v3130, %v3143
    %3145 = vdwg.mxu0
    %3146 = vmatpush.bf16.msra.mxu0 %v3033
    %3147 = vmatpush.bf16.msra.mxu0 %v3032
    %3148 = vmatpush.bf16.msra.mxu0 %v3031
    %3149 = vmatpush.bf16.msra.mxu0 %v3030
    %3150 = vmatpush.bf16.msra.mxu0 %v3029
    %3151 = vmatpush.bf16.msra.mxu0 %v3028
    %3152 = vmatpush.bf16.msra.mxu0 %v3027
    %3153 = vmatpush.bf16.msra.mxu0 %v3026
    %3154 = vmatmul.bf16.gmra.mxu0 %v2794
    %v3155 = vpop.f32.mrf.mxu0
    %v3156 = vadd.f32 %v3142, %v3155
    %v3157 = vpop.f32.mrf.mxu0
    %v3158 = vadd.f32 %v3144, %v3157
    %3159 = vdwg.mxu0
    %3160 = vmatpush.bf16.msra.mxu0 %v3041
    %3161 = vmatpush.bf16.msra.mxu0 %v3040
    %3162 = vmatpush.bf16.msra.mxu0 %v3039
    %3163 = vmatpush.bf16.msra.mxu0 %v3038
    %3164 = vmatpush.bf16.msra.mxu0 %v3037
    %3165 = vmatpush.bf16.msra.mxu0 %v3036
    %3166 = vmatpush.bf16.msra.mxu0 %v3035
    %3167 = vmatpush.bf16.msra.mxu0 %v3034
    %3168 = vmatmul.bf16.gmra.mxu0 %v2795
    %v3169 = vpop.f32.mrf.mxu0
    %v3170 = vadd.f32 %v3156, %v3169
    %v3171 = vpop.f32.mrf.mxu0
    %v3172 = vadd.f32 %v3158, %v3171
    %3173 = vdwg.mxu0
    %3174 = vst [vmem:[#allocation15] sm:$0xff] %v2486
    %3175 = vst [vmem:[#allocation15 + $0x8] sm:$0xff] %v2668
    %3176 = vst [vmem:[#allocation19] sm:$0xff] %v2488
    %3177 = vst [vmem:[#allocation19 + $0x8] sm:$0xff] %v2670
    %3178 = vst [vmem:[#allocation18] sm:$0xff] %v3170
    %3179 = vst [vmem:[#allocation16] sm:$0xff] %v3172
    // Predicated region
    $region62: #{decoder_cada_forward.1} parent=1 // pred_check
      _
    $region63: #{decoder_cada_forward.1} parent=1 // pred_check_branch
      %3181 = sbr.rel (0) target = $region65
    $region64: #{decoder_cada_forward.1} parent=1 // pred_region
      %3183 = vsyncadd [#allocation5], 0
      %s3185 = sshll.u32 [#allocation15], 4
      %s3186 = int_to_ptr.vmem [resolvable:$true] %s3185
      %s3187 = sshll.u32 %s8, 4
      %s3188 = int_to_ptr.hbm [resolvable:$true] %s3187
      %3190 = dma.vmem_to_hbm [thread:$0]  %s3186, 256, %s3188, [#allocation5]
    $region65: #{decoder_cada_forward.1} parent=1 // pred_fallthru
      _
    // Predicated region
    $region66: #{decoder_cada_forward.1} parent=1 // pred_check
      _
    $region67: #{decoder_cada_forward.1} parent=1 // pred_check_branch
      %3192 = sbr.rel (0) target = $region69
    $region68: #{decoder_cada_forward.1} parent=1 // pred_region
      %3194 = vsyncadd [#allocation17], 0
      %s3196 = sshll.u32 [#allocation16], 4
      %s3197 = int_to_ptr.vmem [resolvable:$true] %s3196
      %s3198 = sshll.u32 %s9, 4
      %s3199 = int_to_ptr.hbm [resolvable:$true] %s3198
      %3201 = dma.vmem_to_hbm [thread:$0]  %s3197, 128, %s3199, [#allocation17]
    $region69: #{decoder_cada_forward.1} parent=1 // pred_fallthru
      _
    // Predicated region
    $region70: #{decoder_cada_forward.1} parent=1 // pred_check
      _
    $region71: #{decoder_cada_forward.1} parent=1 // pred_check_branch
      %3203 = sbr.rel (0) target = $region73
    $region72: #{decoder_cada_forward.1} parent=1 // pred_region
      %3205 = vsyncadd [#allocation17], 0
      %s3207 = sshll.u32 [#allocation18], 4
      %s3208 = int_to_ptr.vmem [resolvable:$true] %s3207
      %s3209 = sshll.u32 %s10, 4
      %s3210 = int_to_ptr.hbm [resolvable:$true] %s3209
      %3212 = dma.vmem_to_hbm [thread:$0]  %s3208, 128, %s3210, [#allocation17]
    $region73: #{decoder_cada_forward.1} parent=1 // pred_fallthru
      _
    // Predicated region
    $region74: #{decoder_cada_forward.1} parent=1 // pred_check
      _
    $region75: #{decoder_cada_forward.1} parent=1 // pred_check_branch
      %3214 = sbr.rel (0) target = $region77
    $region76: #{decoder_cada_forward.1} parent=1 // pred_region
      %3216 = vsyncadd [#allocation20], 0
      %s3218 = sshll.u32 [#allocation19], 4
      %s3219 = int_to_ptr.vmem [resolvable:$true] %s3218
      %s3220 = sshll.u32 %s11, 4
      %s3221 = int_to_ptr.hbm [resolvable:$true] %s3220
      %3223 = dma.vmem_to_hbm [thread:$0]  %s3219, 256, %s3221, [#allocation20]
    $region77: #{decoder_cada_forward.1} parent=1 // pred_fallthru
      _
    // Predicated region
    $region78: #{decoder_cada_forward.1} parent=1 // pred_check
      _
    $region79: #{decoder_cada_forward.1} parent=1 // pred_check_branch
      %3225 = sbr.rel (0) target = $region81
    $region80: #{decoder_cada_forward.1} parent=1 // pred_region
      %3227 = dma.done [#allocation5], 256
    $region81: #{decoder_cada_forward.1} parent=1 // pred_fallthru
      _
    // Predicated region
    $region82: #{decoder_cada_forward.1} parent=1 // pred_check
      _
    $region83: #{decoder_cada_forward.1} parent=1 // pred_check_branch
      %3229 = sbr.rel (0) target = $region85
    $region84: #{decoder_cada_forward.1} parent=1 // pred_region
      %3231 = dma.done [#allocation17], 128
    $region85: #{decoder_cada_forward.1} parent=1 // pred_fallthru
      _
    // Predicated region
    $region86: #{decoder_cada_forward.1} parent=1 // pred_check
      _
    $region87: #{decoder_cada_forward.1} parent=1 // pred_check_branch
      %3233 = sbr.rel (0) target = $region89
    $region88: #{decoder_cada_forward.1} parent=1 // pred_region
      %3235 = dma.done [#allocation17], 128
    $region89: #{decoder_cada_forward.1} parent=1 // pred_fallthru
      _
    // Predicated region
    $region90: #{decoder_cada_forward.1} parent=1 // pred_check
      _
    $region91: #{decoder_cada_forward.1} parent=1 // pred_check_branch
      %3237 = sbr.rel (0) target = $region93
    $region92: #{decoder_cada_forward.1} parent=1 // pred_region
      %3239 = dma.done [#allocation20], 256
    $region93: #{decoder_cada_forward.1} parent=1 // pred_fallthru
      _
    %3240 = vsyncpa [#allocation4], 1
    %3241 = vsyncpa [#allocation7], 1
    %3242 = vsyncpa [#allocation10], 1
    %3243 = vsyncpa [#allocation13], 1
    %3244 = vsyncpa [#allocation5], 1
    %3245 = vsyncpa [#allocation17], 1
    %3246 = vsyncpa [#allocation20], 1

</llo_original>
